<compile_context>
chip_gen: v5e
topology: v5e:2x2
jax: 0.10.0
libtpu: 0.0.40
codegen_flags: <defaults>
</compile_context>

<pallas_src>
import functools
import math

import jax
import jax.numpy as jnp
from jax.experimental import pallas as pl
from jax.experimental.pallas import tpu as pltpu

F32 = jnp.float32
BF16 = jnp.bfloat16
HEADS = 4  # attn.heads of the host attention module


# ----------------------------------------------------------------------------
# shared attention math (used by the kernels and the pure-JAX reference).
# `recip` lets the kernel use pl.reciprocal while the reference uses plain
# division (pl.reciprocal has no vmap batching rule).
# ----------------------------------------------------------------------------
def _attn_core(h, enc, wq, bq, wk, bk, wv, bv, wo, bo, *, heads, recip):
    """h: (TS, D) bf16 tokens, enc: (L, Dc) bf16 encoder tokens -> (TS, D) f32.

    Weights are bf16 (wq/bq already carry the 1/sqrt(head_dim) scale),
    biases f32.  All matmuls accumulate in f32; softmax math is f32.
    """
    ts, d = h.shape
    hd = d // heads

    # Lane-dense projections: single full-width MXU passes.
    q = (jnp.dot(h, wq, preferred_element_type=F32) + bq).astype(BF16)    # (TS, D)
    k = (jnp.dot(enc, wk, preferred_element_type=F32) + bk).astype(BF16)  # (L, D)
    v = (jnp.dot(enc, wv, preferred_element_type=F32) + bv).astype(BF16)  # (L, D)

    # Per-head SDPA (head_dim contraction is inherent); heads is a small
    # static count -> unrolled Python loop over static lane slices.
    head_outs = []
    for hi in range(heads):
        sl = slice(hi * hd, (hi + 1) * hd)
        qh, kh, vh = q[:, sl], k[:, sl], v[:, sl]
        s = jax.lax.dot_general(qh, kh, (((1,), (1,)), ((), ())),
                                preferred_element_type=F32)               # (TS, L)
        s = s - jnp.max(s, axis=-1, keepdims=True)
        p = jnp.exp(s)
        p = p * recip(jnp.sum(p, axis=-1, keepdims=True))
        head_outs.append(jnp.dot(p.astype(BF16), vh,
                                 preferred_element_type=F32))             # (TS, hd)

    # Head merge via lane concat -> one lane-dense to_out matmul.
    o = jnp.concatenate(head_outs, axis=-1).astype(BF16)                  # (TS, D)
    o = jnp.dot(o, wo, preferred_element_type=F32) + bo                   # (TS, D) f32

    # to_out[1] is Dropout (identity in eval); residual_connection=True,
    # rescale_output_factor = 1.0
    return o + h.astype(F32)


# ----------------------------------------------------------------------------
# kernels
# ----------------------------------------------------------------------------
def _write_kernel(h_ref, enc_ref,
                  wq_ref, bq_ref, wk_ref, bk_ref, wv_ref, bv_ref,
                  wo_ref, bo_ref, wr_ref, br_ref,
                  out_ref, mem_ref, *, heads):
    o = _attn_core(h_ref[0], enc_ref[0],
                   wq_ref[...], bq_ref[...], wk_ref[...], bk_ref[...],
                   wv_ref[...], bv_ref[...], wo_ref[...], bo_ref[...],
                   heads=heads,
                   recip=lambda x: pl.reciprocal(x, approx=True))
    out_ref[0] = o.astype(out_ref.dtype)
    # reference_mode == 'write':  self._memory = self.ref_net(hidden_states)
    mem = jnp.dot(o.astype(BF16), wr_ref[...],
                  preferred_element_type=F32) + br_ref[...]
    mem_ref[0] = mem.astype(mem_ref.dtype)


def _read_kernel(h_ref, enc_ref, mem_ref, blend_ref,
                 wq_ref, bq_ref, wk_ref, bk_ref, wv_ref, bv_ref,
                 wo_ref, bo_ref,
                 out_ref, *, heads):
    o = _attn_core(h_ref[0], enc_ref[0],
                   wq_ref[...], bq_ref[...], wk_ref[...], bk_ref[...],
                   wv_ref[...], bv_ref[...], wo_ref[...], bo_ref[...],
                   heads=heads,
                   recip=lambda x: pl.reciprocal(x, approx=True))
    # reference_mode == 'read':
    #   hidden_states = blend * memory + (1 - blend) * hidden_states
    b = blend_ref[...]                               # (1, D), broadcasts over TS
    mem = mem_ref[0].astype(F32)
    out_ref[0] = (b * mem + (1.0 - b) * o).astype(out_ref.dtype)


# ----------------------------------------------------------------------------
# wrappers
# ----------------------------------------------------------------------------
def _device_kind():
    try:
        return jax.devices()[0].device_kind.lower()
    except Exception:
        return ""


def _tile_cfg():
    """(target S-tile, vmem_limit_bytes) per TPU generation."""
    kind = _device_kind()
    if "v7" in kind:
        return 256, 48 * 1024 * 1024      # 64 MiB physical VMEM -> smaller tiles
    return 512, 100 * 1024 * 1024         # v5e / v6e: 128 MiB physical VMEM


def _pick_ts(s, target):
    best = s
    for t in range(8, min(s, target) + 1, 8):
        if s % t == 0:
            best = t
    return best


def _w_spec(shape):
    # whole-array block (block_shape == full array dims satisfies the (8,128)
    # rule); constant index_map -> weights stay resident, no per-step re-DMA.
    n = len(shape)
    return pl.BlockSpec(shape, lambda b, s, n=n: (0,) * n)


def pack_params(p, heads):
    """Raw (D_in, D_out) Linear params -> kernel weight layout.

    The 1/sqrt(head_dim) attention scale is folded into wq / bq.
    """
    d = p["wq"].shape[1]
    assert d % heads == 0
    scale = 1.0 / math.sqrt(d // heads)
    return {
        "heads": heads,
        "wq": (p["wq"] * scale).astype(BF16), "bq": (p["bq"] * scale).astype(F32),
        "wk": p["wk"].astype(BF16), "bk": p["bk"].astype(F32),
        "wv": p["wv"].astype(BF16), "bv": p["bv"].astype(F32),
        "wo": p["wo"].astype(BF16), "bo": p["bo"].astype(F32),
        "wr": p["wr"].astype(BF16), "br": p["br"].astype(F32),
        "blend": p["blend"].astype(F32),
    }


def _nbytes(*arrays):
    return int(sum(int(a.size) * a.dtype.itemsize for a in arrays))


def _attn_flops(B, S, L, D, Dc):
    return int(2 * B * (S * D * D          # q projection
                        + 2 * L * Dc * D   # k / v projections
                        + 2 * S * L * D    # qk^T + pv
                        + S * D * D))      # to_out


def ref_attn_write(h, enc, pk, *, ts=None):
    """Write pass: returns (hidden_states bf16, memory bf16)."""
    h = h.astype(BF16)
    enc = enc.astype(BF16)
    B, S, D = h.shape
    L, Dc = enc.shape[1], enc.shape[2]
    heads = pk["heads"]
    target_ts, vmem_limit = _tile_cfg()
    ts = _pick_ts(S, target_ts) if ts is None else ts
    assert S % ts == 0

    in_specs = [
        pl.BlockSpec((1, ts, D), lambda b, s: (b, s, 0)),
        pl.BlockSpec((1, L, Dc), lambda b, s: (b, 0, 0)),
        _w_spec(pk["wq"].shape), _w_spec(pk["bq"].shape),
        _w_spec(pk["wk"].shape), _w_spec(pk["bk"].shape),
        _w_spec(pk["wv"].shape), _w_spec(pk["bv"].shape),
        _w_spec(pk["wo"].shape), _w_spec(pk["bo"].shape),
        _w_spec(pk["wr"].shape), _w_spec(pk["br"].shape),
    ]
    out_specs = [pl.BlockSpec((1, ts, D), lambda b, s: (b, s, 0)),
                 pl.BlockSpec((1, ts, D), lambda b, s: (b, s, 0))]
    out_shape = [jax.ShapeDtypeStruct((B, S, D), BF16),
                 jax.ShapeDtypeStruct((B, S, D), BF16)]

    flops = _attn_flops(B, S, L, D, Dc) + int(2 * B * S * D * D)   # + ref_net
    bytes_accessed = (_nbytes(h, enc, pk["wq"], pk["bq"], pk["wk"], pk["bk"],
                              pk["wv"], pk["bv"], pk["wo"], pk["bo"],
                              pk["wr"], pk["br"])
                      + 2 * B * S * D * 2)
    return pl.pallas_call(
        functools.partial(_write_kernel, heads=heads),
        grid=(B, S // ts), in_specs=in_specs, out_specs=out_specs,
        out_shape=out_shape,
        compiler_params=pltpu.CompilerParams(
            dimension_semantics=("parallel", "parallel"),
            vmem_limit_bytes=vmem_limit),
        cost_estimate=pl.CostEstimate(flops=flops,
                                      transcendentals=int(B * heads * S * L),
                                      bytes_accessed=bytes_accessed),
    )(h, enc, pk["wq"], pk["bq"], pk["wk"], pk["bk"], pk["wv"], pk["bv"],
      pk["wo"], pk["bo"], pk["wr"], pk["br"])


def ref_attn_read(h, enc, memory, pk, *, ts=None):
    """Read pass: returns blended hidden_states (bf16)."""
    h = h.astype(BF16)
    enc = enc.astype(BF16)
    memory = memory.astype(BF16)
    B, S, D = h.shape
    L, Dc = enc.shape[1], enc.shape[2]
    heads = pk["heads"]
    target_ts, vmem_limit = _tile_cfg()
    ts = _pick_ts(S, target_ts) if ts is None else ts
    assert S % ts == 0

    in_specs = [
        pl.BlockSpec((1, ts, D), lambda b, s: (b, s, 0)),
        pl.BlockSpec((1, L, Dc), lambda b, s: (b, 0, 0)),
        pl.BlockSpec((1, ts, D), lambda b, s: (b, s, 0)),   # memory (bf16)
        _w_spec(pk["blend"].shape),
        _w_spec(pk["wq"].shape), _w_spec(pk["bq"].shape),
        _w_spec(pk["wk"].shape), _w_spec(pk["bk"].shape),
        _w_spec(pk["wv"].shape), _w_spec(pk["bv"].shape),
        _w_spec(pk["wo"].shape), _w_spec(pk["bo"].shape),
    ]
    out_specs = pl.BlockSpec((1, ts, D), lambda b, s: (b, s, 0))
    out_shape = jax.ShapeDtypeStruct((B, S, D), BF16)

    flops = _attn_flops(B, S, L, D, Dc)
    bytes_accessed = (_nbytes(h, enc, memory, pk["blend"], pk["wq"], pk["bq"],
                              pk["wk"], pk["bk"], pk["wv"], pk["bv"],
                              pk["wo"], pk["bo"])
                      + B * S * D * 2)
    return pl.pallas_call(
        functools.partial(_read_kernel, heads=heads),
        grid=(B, S // ts), in_specs=in_specs, out_specs=out_specs,
        out_shape=out_shape,
        compiler_params=pltpu.CompilerParams(
            dimension_semantics=("parallel", "parallel"),
            vmem_limit_bytes=vmem_limit),
        cost_estimate=pl.CostEstimate(flops=flops,
                                      transcendentals=int(B * heads * S * L),
                                      bytes_accessed=bytes_accessed),
    )(h, enc, memory, pk["blend"], pk["wq"], pk["bq"], pk["wk"], pk["bk"],
      pk["wv"], pk["bv"], pk["wo"], pk["bo"])


# ----------------------------------------------------------------------------
# pure-JAX reference (for correctness check).  Same math / dtype pipeline as
# the kernels but plain division for the softmax denominator.
# ----------------------------------------------------------------------------
def _jax_attn(h, enc, pk):
    fn = lambda hb, eb: _attn_core(hb, eb, pk["wq"], pk["bq"], pk["wk"], pk["bk"],
                                   pk["wv"], pk["bv"], pk["wo"], pk["bo"],
                                   heads=pk["heads"], recip=lambda x: 1.0 / x)
    return jax.vmap(fn)(h.astype(BF16), enc.astype(BF16))


def ref_write_jax(h, enc, pk):
    o = _jax_attn(h, enc, pk)                                  # (B, S, D) f32
    mem = jnp.einsum("bsd,de->bse", o.astype(BF16), pk["wr"],
                     preferred_element_type=F32) + pk["br"]
    return o, mem.astype(BF16)


def ref_read_jax(h, enc, memory, pk):
    o = _jax_attn(h, enc, pk)
    b = pk["blend"][None]                                      # (1, 1, D)
    return b * memory.astype(F32) + (1.0 - b) * o


# ----------------------------------------------------------------------------
# main
# ----------------------------------------------------------------------------
if __name__ == "__main__":
    B, S, D = 2, 64, 32          # batch, seq (= 8x8 spatial), hidden_size
    L, Dc = 8, 16                # encoder seq, cross_attention_dim
    TS = 32                      # small S-tile so the tiled grid path is exercised
    key = jax.random.PRNGKey(0)
    ks = jax.random.split(key, 16)

    def w(k, shape, scale=0.05):
        return (scale * jax.random.normal(k, shape)).astype(F32)

    params = {
        # host attention module (attn.to_q / to_k / to_v / to_out[0])
        "wq": w(ks[0], (D, D)),  "bq": w(ks[1], (1, D)),
        "wk": w(ks[2], (Dc, D)), "bk": w(ks[3], (1, D)),
        "wv": w(ks[4], (Dc, D)), "bv": w(ks[5], (1, D)),
        "wo": w(ks[6], (D, D)),  "bo": w(ks[7], (1, D)),
        # ReferenceAttnProcessor2_0.ref_net = nn.Linear(hidden, hidden)
        "wr": w(ks[8], (D, D)),  "br": w(ks[9], (1, D)),
        # ReferenceAttnProcessor2_0.blend (init is zeros; use a deterministic
        # non-zero value so the read/blend path is actually exercised)
        "blend": jax.random.uniform(ks[10], (1, D), dtype=F32),
    }
    pk = pack_params(params, HEADS)

    # simulated UNet activations for the reference ("write") pass and the
    # main ("read") pass, plus shared encoder hidden states
    h_write = w(ks[11], (B, S, D), scale=1.0).astype(BF16)
    h_read = w(ks[12], (B, S, D), scale=1.0).astype(BF16)
    enc = w(ks[13], (B, L, Dc), scale=1.0).astype(BF16)

    # write pass: run attention on the reference activations, store memory
    out_w, memory = ref_attn_write(h_write, enc, pk, ts=TS)
    # read pass: run attention on the main activations, blend with memory
    out_r = ref_attn_read(h_read, enc, memory, pk, ts=TS)
    jax.block_until_ready((out_w, memory, out_r))

    # correctness vs pure-JAX reference (same bf16/f32 math; tolerance covers
    # the approx EUP reciprocal and the bf16 activation / memory rounding)
    out_w_ref, mem_jax = ref_write_jax(h_write, enc, pk)
    out_r_ref = ref_read_jax(h_read, enc, memory, pk)   # use kernel memory
    assert jnp.allclose(out_w.astype(F32), out_w_ref, atol=3e-2, rtol=3e-2)
    assert jnp.allclose(memory.astype(F32), mem_jax.astype(F32),
                        atol=3e-2, rtol=3e-2)
    assert jnp.allclose(out_r.astype(F32), out_r_ref, atol=3e-2, rtol=3e-2)

    print("KERNEL_OK")
</pallas_src>

<mosaic_0001>
module attributes {stable_mosaic.version = 11 : i64} {
  func.func @_write_kernel(%arg0: i32, %arg1: i32, %arg2: memref<1x32x32xbf16, #tpu.memory_space<vmem>>, %arg3: memref<1x8x16xbf16, #tpu.memory_space<vmem>>, %arg4: memref<32x32xbf16, #tpu.memory_space<vmem>>, %arg5: memref<1x32xf32, #tpu.memory_space<vmem>>, %arg6: memref<16x32xbf16, #tpu.memory_space<vmem>>, %arg7: memref<1x32xf32, #tpu.memory_space<vmem>>, %arg8: memref<16x32xbf16, #tpu.memory_space<vmem>>, %arg9: memref<1x32xf32, #tpu.memory_space<vmem>>, %arg10: memref<32x32xbf16, #tpu.memory_space<vmem>>, %arg11: memref<1x32xf32, #tpu.memory_space<vmem>>, %arg12: memref<32x32xbf16, #tpu.memory_space<vmem>>, %arg13: memref<1x32xf32, #tpu.memory_space<vmem>>, %arg14: memref<1x32x32xbf16, #tpu.memory_space<vmem>>, %arg15: memref<1x32x32xbf16, #tpu.memory_space<vmem>>) attributes {dimension_semantics = [#tpu.dimension_semantics<parallel>, #tpu.dimension_semantics<parallel>], iteration_bounds = array<i64: 2, 2>, scalar_prefetch = 0 : i64, scratch_operands = 0 : i64, tpu.core_type = #tpu.core_type<tc>, window_params = [{transform_indices = @transform_0, window_bounds = array<i64: 1, 32, 32>}, {transform_indices = @transform_1, window_bounds = array<i64: 1, 8, 16>}, {pipeline_mode = #tpu.pipeline_mode<synchronous>, transform_indices = @transform_2, window_bounds = array<i64: 32, 32>}, {pipeline_mode = #tpu.pipeline_mode<synchronous>, transform_indices = @transform_3, window_bounds = array<i64: 1, 32>}, {pipeline_mode = #tpu.pipeline_mode<synchronous>, transform_indices = @transform_4, window_bounds = array<i64: 16, 32>}, {pipeline_mode = #tpu.pipeline_mode<synchronous>, transform_indices = @transform_5, window_bounds = array<i64: 1, 32>}, {pipeline_mode = #tpu.pipeline_mode<synchronous>, transform_indices = @transform_6, window_bounds = array<i64: 16, 32>}, {pipeline_mode = #tpu.pipeline_mode<synchronous>, transform_indices = @transform_7, window_bounds = array<i64: 1, 32>}, {pipeline_mode = #tpu.pipeline_mode<synchronous>, transform_indices = @transform_8, window_bounds = array<i64: 32, 32>}, {pipeline_mode = #tpu.pipeline_mode<synchronous>, transform_indices = @transform_9, window_bounds = array<i64: 1, 32>}, {pipeline_mode = #tpu.pipeline_mode<synchronous>, transform_indices = @transform_10, window_bounds = array<i64: 32, 32>}, {pipeline_mode = #tpu.pipeline_mode<synchronous>, transform_indices = @transform_11, window_bounds = array<i64: 1, 32>}, {transform_indices = @transform_12, window_bounds = array<i64: 1, 32, 32>}, {transform_indices = @transform_13, window_bounds = array<i64: 1, 32, 32>}]} {
    %c0 = arith.constant 0 : index
    %c0_0 = arith.constant 0 : index
    %c0_1 = arith.constant 0 : index
    %0 = vector.load %arg2[%c0, %c0_0, %c0_1] : memref<1x32x32xbf16, #tpu.memory_space<vmem>>, vector<1x32x32xbf16>
    %1 = vector.shape_cast %0 : vector<1x32x32xbf16> to vector<32x32xbf16>
    %c0_2 = arith.constant 0 : index
    %c0_3 = arith.constant 0 : index
    %c0_4 = arith.constant 0 : index
    %2 = vector.load %arg3[%c0_2, %c0_3, %c0_4] : memref<1x8x16xbf16, #tpu.memory_space<vmem>>, vector<1x8x16xbf16>
    %3 = vector.shape_cast %2 : vector<1x8x16xbf16> to vector<8x16xbf16>
    %c0_5 = arith.constant 0 : index
    %c0_6 = arith.constant 0 : index
    %4 = vector.load %arg4[%c0_5, %c0_6] : memref<32x32xbf16, #tpu.memory_space<vmem>>, vector<32x32xbf16>
    %c0_7 = arith.constant 0 : index
    %c0_8 = arith.constant 0 : index
    %5 = vector.load %arg5[%c0_7, %c0_8] : memref<1x32xf32, #tpu.memory_space<vmem>>, vector<1x32xf32>
    %c0_9 = arith.constant 0 : index
    %c0_10 = arith.constant 0 : index
    %6 = vector.load %arg6[%c0_9, %c0_10] : memref<16x32xbf16, #tpu.memory_space<vmem>>, vector<16x32xbf16>
    %c0_11 = arith.constant 0 : index
    %c0_12 = arith.constant 0 : index
    %7 = vector.load %arg7[%c0_11, %c0_12] : memref<1x32xf32, #tpu.memory_space<vmem>>, vector<1x32xf32>
    %c0_13 = arith.constant 0 : index
    %c0_14 = arith.constant 0 : index
    %8 = vector.load %arg8[%c0_13, %c0_14] : memref<16x32xbf16, #tpu.memory_space<vmem>>, vector<16x32xbf16>
    %c0_15 = arith.constant 0 : index
    %c0_16 = arith.constant 0 : index
    %9 = vector.load %arg9[%c0_15, %c0_16] : memref<1x32xf32, #tpu.memory_space<vmem>>, vector<1x32xf32>
    %c0_17 = arith.constant 0 : index
    %c0_18 = arith.constant 0 : index
    %10 = vector.load %arg10[%c0_17, %c0_18] : memref<32x32xbf16, #tpu.memory_space<vmem>>, vector<32x32xbf16>
    %c0_19 = arith.constant 0 : index
    %c0_20 = arith.constant 0 : index
    %11 = vector.load %arg11[%c0_19, %c0_20] : memref<1x32xf32, #tpu.memory_space<vmem>>, vector<1x32xf32>
    %cst = arith.constant dense<0.000000e+00> : vector<32x32xf32>
    %12 = tpu.matmul %1, %4, %cst {dimension_numbers = #tpu.dot_dimension_numbers<[1], [0], [0], [1], [0, 0, 1, 1], [], []>} : vector<32x32xbf16>, vector<32x32xbf16>, vector<32x32xf32> -> vector<32x32xf32>
    %13 = vector.broadcast %5 : vector<1x32xf32> to vector<32x32xf32>
    %14 = arith.addf %12, %13 : vector<32x32xf32>
    %15 = arith.truncf %14 : vector<32x32xf32> to vector<32x32xbf16>
    %cst_21 = arith.constant dense<0.000000e+00> : vector<8x32xf32>
    %16 = tpu.matmul %3, %6, %cst_21 {dimension_numbers = #tpu.dot_dimension_numbers<[1], [0], [0], [1], [0, 0, 1, 1], [], []>} : vector<8x16xbf16>, vector<16x32xbf16>, vector<8x32xf32> -> vector<8x32xf32>
    %17 = vector.broadcast %7 : vector<1x32xf32> to vector<8x32xf32>
    %18 = arith.addf %16, %17 : vector<8x32xf32>
    %19 = arith.truncf %18 : vector<8x32xf32> to vector<8x32xbf16>
    %cst_22 = arith.constant dense<0.000000e+00> : vector<8x32xf32>
    %20 = tpu.matmul %3, %8, %cst_22 {dimension_numbers = #tpu.dot_dimension_numbers<[1], [0], [0], [1], [0, 0, 1, 1], [], []>} : vector<8x16xbf16>, vector<16x32xbf16>, vector<8x32xf32> -> vector<8x32xf32>
    %21 = vector.broadcast %9 : vector<1x32xf32> to vector<8x32xf32>
    %22 = arith.addf %20, %21 : vector<8x32xf32>
    %23 = arith.truncf %22 : vector<8x32xf32> to vector<8x32xbf16>
    %24 = vector.extract_strided_slice %15 {offsets = [0, 0], sizes = [32, 8], strides = [1, 1]} : vector<32x32xbf16> to vector<32x8xbf16>
    %25 = vector.extract_strided_slice %19 {offsets = [0, 0], sizes = [8, 8], strides = [1, 1]} : vector<8x32xbf16> to vector<8x8xbf16>
    %26 = vector.extract_strided_slice %23 {offsets = [0, 0], sizes = [8, 8], strides = [1, 1]} : vector<8x32xbf16> to vector<8x8xbf16>
    %cst_23 = arith.constant dense<0.000000e+00> : vector<32x8xf32>
    %27 = tpu.matmul %24, %25, %cst_23 {dimension_numbers = #tpu.dot_dimension_numbers<[1], [1], [0], [0], [0, 0, 1, 0], [], []>} : vector<32x8xbf16>, vector<8x8xbf16>, vector<32x8xf32> -> vector<32x8xf32>
    %cst_24 = arith.constant dense<0xFF800000> : vector<32xf32>
    %28 = vector.multi_reduction <maximumf>, %27, %cst_24 [1] : vector<32x8xf32> to vector<32xf32>
    %29 = vector.shape_cast %28 : vector<32xf32> to vector<32x1xf32>
    %30 = vector.broadcast %29 : vector<32x1xf32> to vector<32x8xf32>
    %31 = arith.subf %27, %30 : vector<32x8xf32>
    %32 = math.exp %31 : vector<32x8xf32>
    %cst_25 = arith.constant dense<0.000000e+00> : vector<32xf32>
    %33 = vector.multi_reduction <add>, %32, %cst_25 [1] : vector<32x8xf32> to vector<32xf32>
    %34 = vector.shape_cast %33 : vector<32xf32> to vector<32x1xf32>
    %35 = tpu.reciprocal %34 {approx = true} : vector<32x1xf32> -> vector<32x1xf32>
    %36 = vector.broadcast %35 : vector<32x1xf32> to vector<32x8xf32>
    %37 = arith.mulf %32, %36 : vector<32x8xf32>
    %38 = arith.truncf %37 : vector<32x8xf32> to vector<32x8xbf16>
    %cst_26 = arith.constant dense<0.000000e+00> : vector<32x8xf32>
    %39 = tpu.matmul %38, %26, %cst_26 {dimension_numbers = #tpu.dot_dimension_numbers<[1], [0], [0], [1], [0, 0, 1, 1], [], []>} : vector<32x8xbf16>, vector<8x8xbf16>, vector<32x8xf32> -> vector<32x8xf32>
    %40 = vector.extract_strided_slice %15 {offsets = [0, 8], sizes = [32, 8], strides = [1, 1]} : vector<32x32xbf16> to vector<32x8xbf16>
    %41 = vector.extract_strided_slice %19 {offsets = [0, 8], sizes = [8, 8], strides = [1, 1]} : vector<8x32xbf16> to vector<8x8xbf16>
    %42 = vector.extract_strided_slice %23 {offsets = [0, 8], sizes = [8, 8], strides = [1, 1]} : vector<8x32xbf16> to vector<8x8xbf16>
    %cst_27 = arith.constant dense<0.000000e+00> : vector<32x8xf32>
    %43 = tpu.matmul %40, %41, %cst_27 {dimension_numbers = #tpu.dot_dimension_numbers<[1], [1], [0], [0], [0, 0, 1, 0], [], []>} : vector<32x8xbf16>, vector<8x8xbf16>, vector<32x8xf32> -> vector<32x8xf32>
    %cst_28 = arith.constant dense<0xFF800000> : vector<32xf32>
    %44 = vector.multi_reduction <maximumf>, %43, %cst_28 [1] : vector<32x8xf32> to vector<32xf32>
    %45 = vector.shape_cast %44 : vector<32xf32> to vector<32x1xf32>
    %46 = vector.broadcast %45 : vector<32x1xf32> to vector<32x8xf32>
    %47 = arith.subf %43, %46 : vector<32x8xf32>
    %48 = math.exp %47 : vector<32x8xf32>
    %cst_29 = arith.constant dense<0.000000e+00> : vector<32xf32>
    %49 = vector.multi_reduction <add>, %48, %cst_29 [1] : vector<32x8xf32> to vector<32xf32>
    %50 = vector.shape_cast %49 : vector<32xf32> to vector<32x1xf32>
    %51 = tpu.reciprocal %50 {approx = true} : vector<32x1xf32> -> vector<32x1xf32>
    %52 = vector.broadcast %51 : vector<32x1xf32> to vector<32x8xf32>
    %53 = arith.mulf %48, %52 : vector<32x8xf32>
    %54 = arith.truncf %53 : vector<32x8xf32> to vector<32x8xbf16>
    %cst_30 = arith.constant dense<0.000000e+00> : vector<32x8xf32>
    %55 = tpu.matmul %54, %42, %cst_30 {dimension_numbers = #tpu.dot_dimension_numbers<[1], [0], [0], [1], [0, 0, 1, 1], [], []>} : vector<32x8xbf16>, vector<8x8xbf16>, vector<32x8xf32> -> vector<32x8xf32>
    %56 = vector.extract_strided_slice %15 {offsets = [0, 16], sizes = [32, 8], strides = [1, 1]} : vector<32x32xbf16> to vector<32x8xbf16>
    %57 = vector.extract_strided_slice %19 {offsets = [0, 16], sizes = [8, 8], strides = [1, 1]} : vector<8x32xbf16> to vector<8x8xbf16>
    %58 = vector.extract_strided_slice %23 {offsets = [0, 16], sizes = [8, 8], strides = [1, 1]} : vector<8x32xbf16> to vector<8x8xbf16>
    %cst_31 = arith.constant dense<0.000000e+00> : vector<32x8xf32>
    %59 = tpu.matmul %56, %57, %cst_31 {dimension_numbers = #tpu.dot_dimension_numbers<[1], [1], [0], [0], [0, 0, 1, 0], [], []>} : vector<32x8xbf16>, vector<8x8xbf16>, vector<32x8xf32> -> vector<32x8xf32>
    %cst_32 = arith.constant dense<0xFF800000> : vector<32xf32>
    %60 = vector.multi_reduction <maximumf>, %59, %cst_32 [1] : vector<32x8xf32> to vector<32xf32>
    %61 = vector.shape_cast %60 : vector<32xf32> to vector<32x1xf32>
    %62 = vector.broadcast %61 : vector<32x1xf32> to vector<32x8xf32>
    %63 = arith.subf %59, %62 : vector<32x8xf32>
    %64 = math.exp %63 : vector<32x8xf32>
    %cst_33 = arith.constant dense<0.000000e+00> : vector<32xf32>
    %65 = vector.multi_reduction <add>, %64, %cst_33 [1] : vector<32x8xf32> to vector<32xf32>
    %66 = vector.shape_cast %65 : vector<32xf32> to vector<32x1xf32>
    %67 = tpu.reciprocal %66 {approx = true} : vector<32x1xf32> -> vector<32x1xf32>
    %68 = vector.broadcast %67 : vector<32x1xf32> to vector<32x8xf32>
    %69 = arith.mulf %64, %68 : vector<32x8xf32>
    %70 = arith.truncf %69 : vector<32x8xf32> to vector<32x8xbf16>
    %cst_34 = arith.constant dense<0.000000e+00> : vector<32x8xf32>
    %71 = tpu.matmul %70, %58, %cst_34 {dimension_numbers = #tpu.dot_dimension_numbers<[1], [0], [0], [1], [0, 0, 1, 1], [], []>} : vector<32x8xbf16>, vector<8x8xbf16>, vector<32x8xf32> -> vector<32x8xf32>
    %72 = vector.extract_strided_slice %15 {offsets = [0, 24], sizes = [32, 8], strides = [1, 1]} : vector<32x32xbf16> to vector<32x8xbf16>
    %73 = vector.extract_strided_slice %19 {offsets = [0, 24], sizes = [8, 8], strides = [1, 1]} : vector<8x32xbf16> to vector<8x8xbf16>
    %74 = vector.extract_strided_slice %23 {offsets = [0, 24], sizes = [8, 8], strides = [1, 1]} : vector<8x32xbf16> to vector<8x8xbf16>
    %cst_35 = arith.constant dense<0.000000e+00> : vector<32x8xf32>
    %75 = tpu.matmul %72, %73, %cst_35 {dimension_numbers = #tpu.dot_dimension_numbers<[1], [1], [0], [0], [0, 0, 1, 0], [], []>} : vector<32x8xbf16>, vector<8x8xbf16>, vector<32x8xf32> -> vector<32x8xf32>
    %cst_36 = arith.constant dense<0xFF800000> : vector<32xf32>
    %76 = vector.multi_reduction <maximumf>, %75, %cst_36 [1] : vector<32x8xf32> to vector<32xf32>
    %77 = vector.shape_cast %76 : vector<32xf32> to vector<32x1xf32>
    %78 = vector.broadcast %77 : vector<32x1xf32> to vector<32x8xf32>
    %79 = arith.subf %75, %78 : vector<32x8xf32>
    %80 = math.exp %79 : vector<32x8xf32>
    %cst_37 = arith.constant dense<0.000000e+00> : vector<32xf32>
    %81 = vector.multi_reduction <add>, %80, %cst_37 [1] : vector<32x8xf32> to vector<32xf32>
    %82 = vector.shape_cast %81 : vector<32xf32> to vector<32x1xf32>
    %83 = tpu.reciprocal %82 {approx = true} : vector<32x1xf32> -> vector<32x1xf32>
    %84 = vector.broadcast %83 : vector<32x1xf32> to vector<32x8xf32>
    %85 = arith.mulf %80, %84 : vector<32x8xf32>
    %86 = arith.truncf %85 : vector<32x8xf32> to vector<32x8xbf16>
    %cst_38 = arith.constant dense<0.000000e+00> : vector<32x8xf32>
    %87 = tpu.matmul %86, %74, %cst_38 {dimension_numbers = #tpu.dot_dimension_numbers<[1], [0], [0], [1], [0, 0, 1, 1], [], []>} : vector<32x8xbf16>, vector<8x8xbf16>, vector<32x8xf32> -> vector<32x8xf32>
    %88 = tpu.concatenate %39, %55, %71, %87 in 1 : vector<32x8xf32>, vector<32x8xf32>, vector<32x8xf32>, vector<32x8xf32> -> vector<32x32xf32>
    %89 = arith.truncf %88 : vector<32x32xf32> to vector<32x32xbf16>
    %cst_39 = arith.constant dense<0.000000e+00> : vector<32x32xf32>
    %90 = tpu.matmul %89, %10, %cst_39 {dimension_numbers = #tpu.dot_dimension_numbers<[1], [0], [0], [1], [0, 0, 1, 1], [], []>} : vector<32x32xbf16>, vector<32x32xbf16>, vector<32x32xf32> -> vector<32x32xf32>
    %91 = vector.broadcast %11 : vector<1x32xf32> to vector<32x32xf32>
    %92 = arith.addf %90, %91 : vector<32x32xf32>
    %93 = arith.extf %1 : vector<32x32xbf16> to vector<32x32xf32>
    %94 = arith.addf %92, %93 : vector<32x32xf32>
    %95 = arith.truncf %94 : vector<32x32xf32> to vector<32x32xbf16>
    %c0_40 = arith.constant 0 : index
    %c0_41 = arith.constant 0 : index
    %c0_42 = arith.constant 0 : index
    %96 = vector.load %arg14[%c0_40, %c0_41, %c0_42] : memref<1x32x32xbf16, #tpu.memory_space<vmem>>, vector<1x32x32xbf16>
    %97 = vector.shape_cast %96 : vector<1x32x32xbf16> to vector<32x32xbf16>
    %98 = vector.shape_cast %95 : vector<32x32xbf16> to vector<1x32x32xbf16>
    tpu.vector_store %arg14[%c0_40, %c0_41, %c0_42], %98 {strides = array<i32>} : memref<1x32x32xbf16, #tpu.memory_space<vmem>>, vector<1x32x32xbf16>,
    %99 = arith.truncf %94 : vector<32x32xf32> to vector<32x32xbf16>
    %c0_43 = arith.constant 0 : index
    %c0_44 = arith.constant 0 : index
    %100 = vector.load %arg12[%c0_43, %c0_44] : memref<32x32xbf16, #tpu.memory_space<vmem>>, vector<32x32xbf16>
    %cst_45 = arith.constant dense<0.000000e+00> : vector<32x32xf32>
    %101 = tpu.matmul %99, %100, %cst_45 {dimension_numbers = #tpu.dot_dimension_numbers<[1], [0], [0], [1], [0, 0, 1, 1], [], []>} : vector<32x32xbf16>, vector<32x32xbf16>, vector<32x32xf32> -> vector<32x32xf32>
    %c0_46 = arith.constant 0 : index
    %c0_47 = arith.constant 0 : index
    %102 = vector.load %arg13[%c0_46, %c0_47] : memref<1x32xf32, #tpu.memory_space<vmem>>, vector<1x32xf32>
    %103 = vector.broadcast %102 : vector<1x32xf32> to vector<32x32xf32>
    %104 = arith.addf %101, %103 : vector<32x32xf32>
    %105 = arith.truncf %104 : vector<32x32xf32> to vector<32x32xbf16>
    %c0_48 = arith.constant 0 : index
    %c0_49 = arith.constant 0 : index
    %c0_50 = arith.constant 0 : index
    %106 = vector.load %arg15[%c0_48, %c0_49, %c0_50] : memref<1x32x32xbf16, #tpu.memory_space<vmem>>, vector<1x32x32xbf16>
    %107 = vector.shape_cast %106 : vector<1x32x32xbf16> to vector<32x32xbf16>
    %108 = vector.shape_cast %105 : vector<32x32xbf16> to vector<1x32x32xbf16>
    tpu.vector_store %arg15[%c0_48, %c0_49, %c0_50], %108 {strides = array<i32>} : memref<1x32x32xbf16, #tpu.memory_space<vmem>>, vector<1x32x32xbf16>,
    return
  }
  func.func @transform_0(%arg0: i32, %arg1: i32) -> (i32, i32, i32) {
    %c0_i32 = arith.constant 0 : i32
    %c0_i32_0 = arith.constant 0 : i32
    return %arg0, %arg1, %c0_i32 : i32, i32, i32
  }
  func.func @transform_1(%arg0: i32, %arg1: i32) -> (i32, i32, i32) {
    %c0_i32 = arith.constant 0 : i32
    %c0_i32_0 = arith.constant 0 : i32
    %c0_i32_1 = arith.constant 0 : i32
    return %arg0, %c0_i32, %c0_i32_0 : i32, i32, i32
  }
  func.func @transform_2(%arg0: i32, %arg1: i32) -> (i32, i32) {
    %c0_i32 = arith.constant 0 : i32
    %c0_i32_0 = arith.constant 0 : i32
    %c0_i32_1 = arith.constant 0 : i32
    return %c0_i32, %c0_i32_0 : i32, i32
  }
  func.func @transform_3(%arg0: i32, %arg1: i32) -> (i32, i32) {
    %c0_i32 = arith.constant 0 : i32
    %c0_i32_0 = arith.constant 0 : i32
    %c0_i32_1 = arith.constant 0 : i32
    return %c0_i32, %c0_i32_0 : i32, i32
  }
  func.func @transform_4(%arg0: i32, %arg1: i32) -> (i32, i32) {
    %c0_i32 = arith.constant 0 : i32
    %c0_i32_0 = arith.constant 0 : i32
    %c0_i32_1 = arith.constant 0 : i32
    return %c0_i32, %c0_i32_0 : i32, i32
  }
  func.func @transform_5(%arg0: i32, %arg1: i32) -> (i32, i32) {
    %c0_i32 = arith.constant 0 : i32
    %c0_i32_0 = arith.constant 0 : i32
    %c0_i32_1 = arith.constant 0 : i32
    return %c0_i32, %c0_i32_0 : i32, i32
  }
  func.func @transform_6(%arg0: i32, %arg1: i32) -> (i32, i32) {
    %c0_i32 = arith.constant 0 : i32
    %c0_i32_0 = arith.constant 0 : i32
    %c0_i32_1 = arith.constant 0 : i32
    return %c0_i32, %c0_i32_0 : i32, i32
  }
  func.func @transform_7(%arg0: i32, %arg1: i32) -> (i32, i32) {
    %c0_i32 = arith.constant 0 : i32
    %c0_i32_0 = arith.constant 0 : i32
    %c0_i32_1 = arith.constant 0 : i32
    return %c0_i32, %c0_i32_0 : i32, i32
  }
  func.func @transform_8(%arg0: i32, %arg1: i32) -> (i32, i32) {
    %c0_i32 = arith.constant 0 : i32
    %c0_i32_0 = arith.constant 0 : i32
    %c0_i32_1 = arith.constant 0 : i32
    return %c0_i32, %c0_i32_0 : i32, i32
  }
  func.func @transform_9(%arg0: i32, %arg1: i32) -> (i32, i32) {
    %c0_i32 = arith.constant 0 : i32
    %c0_i32_0 = arith.constant 0 : i32
    %c0_i32_1 = arith.constant 0 : i32
    return %c0_i32, %c0_i32_0 : i32, i32
  }
  func.func @transform_10(%arg0: i32, %arg1: i32) -> (i32, i32) {
    %c0_i32 = arith.constant 0 : i32
    %c0_i32_0 = arith.constant 0 : i32
    %c0_i32_1 = arith.constant 0 : i32
    return %c0_i32, %c0_i32_0 : i32, i32
  }
  func.func @transform_11(%arg0: i32, %arg1: i32) -> (i32, i32) {
    %c0_i32 = arith.constant 0 : i32
    %c0_i32_0 = arith.constant 0 : i32
    %c0_i32_1 = arith.constant 0 : i32
    return %c0_i32, %c0_i32_0 : i32, i32
  }
  func.func @transform_12(%arg0: i32, %arg1: i32) -> (i32, i32, i32) {
    %c0_i32 = arith.constant 0 : i32
    %c0_i32_0 = arith.constant 0 : i32
    return %arg0, %arg1, %c0_i32 : i32, i32, i32
  }
  func.func @transform_13(%arg0: i32, %arg1: i32) -> (i32, i32, i32) {
    %c0_i32 = arith.constant 0 : i32
    %c0_i32_0 = arith.constant 0 : i32
    return %arg0, %arg1, %c0_i32 : i32, i32, i32
  }
}

</mosaic_0001>

<llo_original>
// kernel: tpu_custom_call.1
$region0: #{tpu_custom_call.1}
  #allocation0 [shape = 'u32[]', space=smem, size = 0x4, offset = 0x4, fixed_abs, tag = 'smem constant byte address 0x4 - core index']
  #allocation1 [shape = 'u32[72,128]{1,0:T(1,128)}', space=vmem, size = 0x9000, scoped, tag = 'internal scratch']
  %s0 = inlined_call_operand.vmem [shape: bf16[2,64,32], index: 0, kind: input, shape index: {}]
  %s1 = inlined_call_operand.vmem [shape: bf16[2,8,16], index: 1, kind: input, shape index: {}]
  %s2 = inlined_call_operand.vmem [shape: bf16[32,32], index: 2, kind: input, shape index: {}]
  %s3 = inlined_call_operand.vmem [shape: f32[1,32], index: 3, kind: input, shape index: {}]
  %s4 = inlined_call_operand.vmem [shape: bf16[16,32], index: 4, kind: input, shape index: {}]
  %s5 = inlined_call_operand.vmem [shape: f32[1,32], index: 5, kind: input, shape index: {}]
  %s6 = inlined_call_operand.vmem [shape: bf16[16,32], index: 6, kind: input, shape index: {}]
  %s7 = inlined_call_operand.vmem [shape: f32[1,32], index: 7, kind: input, shape index: {}]
  %s8 = inlined_call_operand.vmem [shape: bf16[32,32], index: 8, kind: input, shape index: {}]
  %s9 = inlined_call_operand.vmem [shape: f32[1,32], index: 9, kind: input, shape index: {}]
  %s10 = inlined_call_operand.vmem [shape: bf16[32,32], index: 10, kind: input, shape index: {}]
  %s11 = inlined_call_operand.vmem [shape: f32[1,32], index: 11, kind: input, shape index: {}]
  %s12 = inlined_call_operand.vmem [shape: bf16[2,64,32], index: 12, kind: output, shape index: {0}]
  %s13 = inlined_call_operand.vmem [shape: bf16[2,64,32], index: 13, kind: output, shape index: {1}]
  %14 = xla_tuple %s12, %s13
  %s15 = sld [smem:[#allocation0]]
  $region89: #{tpu_custom_call.1} parent=0
    _
  %s17 = ssub.s32 1, %s15
  %s18 = scalar_select 0, %s17, %s15
  loop: start=0, step=1, limit=6
  $region2: #{tpu_custom_call.1} parent=0 // loop_pre_header
    _
  $region3: #{tpu_custom_call.1} parent=0 // loop_header
    %s20 = sphi 0, %s24
    %p21 = scmp.ge.s32.totalorder %s20, 6
    %s27 = sphi 0, %s39
    %s28 = sphi 0, %s35
    %s29 = sphi 0, %s27
    %s30 = sphi 0, %s28
    %s31 = sphi 0, %s29
    %s32 = sphi 0, %s30
    %s44 = sphi 0, %s46
    %s47 = sphi 0, %s44
    %s48 = sphi 0, %s47
    %s64 = sphi 0, %s48
    %s70 = sphi 0, %s72
    %s73 = sphi 0, %s70
    %s74 = sphi 0, %s73
    %s90 = sphi 0, %s74
    %s94 = sphi 0, %s94
    %s96 = sphi 0, %s94
    %s97 = sphi 0, %s96
    %s111 = sphi 0, %s97
    %s115 = sphi 0, %s115
    %s117 = sphi 0, %s115
    %s118 = sphi 0, %s117
    %s132 = sphi 0, %s118
    %s136 = sphi 0, %s136
    %s138 = sphi 0, %s136
    %s139 = sphi 0, %s138
    %s153 = sphi 0, %s139
    %s157 = sphi 0, %s157
    %s159 = sphi 0, %s157
    %s160 = sphi 0, %s159
    %s174 = sphi 0, %s160
    %s178 = sphi 0, %s178
    %s180 = sphi 0, %s178
    %s181 = sphi 0, %s180
    %s195 = sphi 0, %s181
    %s199 = sphi 0, %s199
    %s201 = sphi 0, %s199
    %s202 = sphi 0, %s201
    %s216 = sphi 0, %s202
    %s220 = sphi 0, %s220
    %s222 = sphi 0, %s220
    %s223 = sphi 0, %s222
    %s237 = sphi 0, %s223
    %s241 = sphi 0, %s241
    %s243 = sphi 0, %s241
    %s244 = sphi 0, %s243
    %s258 = sphi 0, %s244
    %s262 = sphi 0, %s262
    %s264 = sphi 0, %s262
    %s265 = sphi 0, %s264
    %s279 = sphi 0, %s265
    %s283 = sphi 0, %s283
    %s285 = sphi 0, %s283
    %s286 = sphi 0, %s285
    %s300 = sphi 0, %s286
    %s308 = sphi 0, %s310
    %s311 = sphi 0, %s308
    %s312 = sphi 0, %s311
    %s328 = sphi 0, %s312
    %s336 = sphi 0, %s338
    %s339 = sphi 0, %s336
    %s340 = sphi 0, %s339
    %s356 = sphi 0, %s340
  $region4: #{tpu_custom_call.1} parent=0 // loop_header_branch
    %23 = sbr.rel (%p21) target = $region8
  $region5: #{tpu_custom_call.1} parent=0 // loop_body
    %s25 = ssub.s32 %s20, 1
    %s26 = ssub.s32 %s20, 2
    %s33 = sadd.s32 1, %s28
    %p34 = scmp.ge.s32.totalorder %s33, 2
    %s35 = scalar_select %p34, 0, %s33
    %s36 = sadd.s32 1, %s27
    %s37 = scalar_select %p34, %s36, %s27
    %p38 = scmp.ge.s32.totalorder %s37, 2
    %s39 = scalar_select %p38, 0, %s37
    %s40 = ssub.s32 %s27, %s39
    %s41 = ssub.s32 %s28, %s35
    %s42 = sor.u32 %s40, %s41
    %p43 = scmp.eq.s32.totalorder %s42, 0
    %s45 = sadd.s32 %s44, 1
    %s46 = scalar_select %p43, %s44, %s45
    %p49 = pneg %p43
    %p50 = scmp.eq.s32.totalorder %s20, 3
    %p51 = por %p49, %p50
    %p52 = scmp.ne.s32.totalorder %s44, %s47
    %p53 = scmp.eq.s32.totalorder %s20, 0
    %p54 = por %p52, %p53
    %p55 = scmp.ne.s32.totalorder %s44, %s47
    %p56 = scmp.eq.s32.totalorder %s25, 3
    %p57 = por %p55, %p56
    %p58 = scmp.ne.s32.totalorder %s47, %s48
    %p59 = scmp.eq.s32.totalorder %s25, 0
    %p60 = por %p58, %p59
    %p61 = scmp.ne.s32.totalorder %s47, %s48
    %p62 = scmp.eq.s32.totalorder %s26, 3
    %p63 = por %p61, %p62
    %p65 = scmp.ne.s32.totalorder %s48, %s64
    %p66 = scmp.eq.s32.totalorder %s26, 0
    %p67 = por %p65, %p66
    %s68 = ssub.s32 %s27, %s39
    %p69 = scmp.eq.s32.totalorder %s68, 0
    %s71 = sadd.s32 %s70, 1
    %s72 = scalar_select %p69, %s70, %s71
    %p75 = pneg %p69
    %p76 = scmp.eq.s32.totalorder %s20, 3
    %p77 = por %p75, %p76
    %p78 = scmp.ne.s32.totalorder %s70, %s73
    %p79 = scmp.eq.s32.totalorder %s20, 0
    %p80 = por %p78, %p79
    %p81 = scmp.ne.s32.totalorder %s70, %s73
    %p82 = scmp.eq.s32.totalorder %s25, 3
    %p83 = por %p81, %p82
    %p84 = scmp.ne.s32.totalorder %s73, %s74
    %p85 = scmp.eq.s32.totalorder %s25, 0
    %p86 = por %p84, %p85
    %p87 = scmp.ne.s32.totalorder %s73, %s74
    %p88 = scmp.eq.s32.totalorder %s26, 3
    %p89 = por %p87, %p88
    %p91 = scmp.ne.s32.totalorder %s74, %s90
    %p92 = scmp.eq.s32.totalorder %s26, 0
    %p93 = por %p91, %p92
    %s95 = sadd.s32 %s94, 1
    %p98 = scmp.eq.s32.totalorder %s20, 3
    %p99 = scmp.ne.s32.totalorder %s94, %s96
    %p100 = scmp.eq.s32.totalorder %s20, 0
    %p101 = por %p99, %p100
    %p102 = scmp.ne.s32.totalorder %s94, %s96
    %p103 = scmp.eq.s32.totalorder %s25, 3
    %p104 = por %p102, %p103
    %p105 = scmp.ne.s32.totalorder %s96, %s97
    %p106 = scmp.eq.s32.totalorder %s25, 0
    %p107 = por %p105, %p106
    %p108 = scmp.ne.s32.totalorder %s96, %s97
    %p109 = scmp.eq.s32.totalorder %s26, 3
    %p110 = por %p108, %p109
    %p112 = scmp.ne.s32.totalorder %s97, %s111
    %p113 = scmp.eq.s32.totalorder %s26, 0
    %p114 = por %p112, %p113
    %s116 = sadd.s32 %s115, 1
    %p119 = scmp.eq.s32.totalorder %s20, 3
    %p120 = scmp.ne.s32.totalorder %s115, %s117
    %p121 = scmp.eq.s32.totalorder %s20, 0
    %p122 = por %p120, %p121
    %p123 = scmp.ne.s32.totalorder %s115, %s117
    %p124 = scmp.eq.s32.totalorder %s25, 3
    %p125 = por %p123, %p124
    %p126 = scmp.ne.s32.totalorder %s117, %s118
    %p127 = scmp.eq.s32.totalorder %s25, 0
    %p128 = por %p126, %p127
    %p129 = scmp.ne.s32.totalorder %s117, %s118
    %p130 = scmp.eq.s32.totalorder %s26, 3
    %p131 = por %p129, %p130
    %p133 = scmp.ne.s32.totalorder %s118, %s132
    %p134 = scmp.eq.s32.totalorder %s26, 0
    %p135 = por %p133, %p134
    %s137 = sadd.s32 %s136, 1
    %p140 = scmp.eq.s32.totalorder %s20, 3
    %p141 = scmp.ne.s32.totalorder %s136, %s138
    %p142 = scmp.eq.s32.totalorder %s20, 0
    %p143 = por %p141, %p142
    %p144 = scmp.ne.s32.totalorder %s136, %s138
    %p145 = scmp.eq.s32.totalorder %s25, 3
    %p146 = por %p144, %p145
    %p147 = scmp.ne.s32.totalorder %s138, %s139
    %p148 = scmp.eq.s32.totalorder %s25, 0
    %p149 = por %p147, %p148
    %p150 = scmp.ne.s32.totalorder %s138, %s139
    %p151 = scmp.eq.s32.totalorder %s26, 3
    %p152 = por %p150, %p151
    %p154 = scmp.ne.s32.totalorder %s139, %s153
    %p155 = scmp.eq.s32.totalorder %s26, 0
    %p156 = por %p154, %p155
    %s158 = sadd.s32 %s157, 1
    %p161 = scmp.eq.s32.totalorder %s20, 3
    %p162 = scmp.ne.s32.totalorder %s157, %s159
    %p163 = scmp.eq.s32.totalorder %s20, 0
    %p164 = por %p162, %p163
    %p165 = scmp.ne.s32.totalorder %s157, %s159
    %p166 = scmp.eq.s32.totalorder %s25, 3
    %p167 = por %p165, %p166
    %p168 = scmp.ne.s32.totalorder %s159, %s160
    %p169 = scmp.eq.s32.totalorder %s25, 0
    %p170 = por %p168, %p169
    %p171 = scmp.ne.s32.totalorder %s159, %s160
    %p172 = scmp.eq.s32.totalorder %s26, 3
    %p173 = por %p171, %p172
    %p175 = scmp.ne.s32.totalorder %s160, %s174
    %p176 = scmp.eq.s32.totalorder %s26, 0
    %p177 = por %p175, %p176
    %s179 = sadd.s32 %s178, 1
    %p182 = scmp.eq.s32.totalorder %s20, 3
    %p183 = scmp.ne.s32.totalorder %s178, %s180
    %p184 = scmp.eq.s32.totalorder %s20, 0
    %p185 = por %p183, %p184
    %p186 = scmp.ne.s32.totalorder %s178, %s180
    %p187 = scmp.eq.s32.totalorder %s25, 3
    %p188 = por %p186, %p187
    %p189 = scmp.ne.s32.totalorder %s180, %s181
    %p190 = scmp.eq.s32.totalorder %s25, 0
    %p191 = por %p189, %p190
    %p192 = scmp.ne.s32.totalorder %s180, %s181
    %p193 = scmp.eq.s32.totalorder %s26, 3
    %p194 = por %p192, %p193
    %p196 = scmp.ne.s32.totalorder %s181, %s195
    %p197 = scmp.eq.s32.totalorder %s26, 0
    %p198 = por %p196, %p197
    %s200 = sadd.s32 %s199, 1
    %p203 = scmp.eq.s32.totalorder %s20, 3
    %p204 = scmp.ne.s32.totalorder %s199, %s201
    %p205 = scmp.eq.s32.totalorder %s20, 0
    %p206 = por %p204, %p205
    %p207 = scmp.ne.s32.totalorder %s199, %s201
    %p208 = scmp.eq.s32.totalorder %s25, 3
    %p209 = por %p207, %p208
    %p210 = scmp.ne.s32.totalorder %s201, %s202
    %p211 = scmp.eq.s32.totalorder %s25, 0
    %p212 = por %p210, %p211
    %p213 = scmp.ne.s32.totalorder %s201, %s202
    %p214 = scmp.eq.s32.totalorder %s26, 3
    %p215 = por %p213, %p214
    %p217 = scmp.ne.s32.totalorder %s202, %s216
    %p218 = scmp.eq.s32.totalorder %s26, 0
    %p219 = por %p217, %p218
    %s221 = sadd.s32 %s220, 1
    %p224 = scmp.eq.s32.totalorder %s20, 3
    %p225 = scmp.ne.s32.totalorder %s220, %s222
    %p226 = scmp.eq.s32.totalorder %s20, 0
    %p227 = por %p225, %p226
    %p228 = scmp.ne.s32.totalorder %s220, %s222
    %p229 = scmp.eq.s32.totalorder %s25, 3
    %p230 = por %p228, %p229
    %p231 = scmp.ne.s32.totalorder %s222, %s223
    %p232 = scmp.eq.s32.totalorder %s25, 0
    %p233 = por %p231, %p232
    %p234 = scmp.ne.s32.totalorder %s222, %s223
    %p235 = scmp.eq.s32.totalorder %s26, 3
    %p236 = por %p234, %p235
    %p238 = scmp.ne.s32.totalorder %s223, %s237
    %p239 = scmp.eq.s32.totalorder %s26, 0
    %p240 = por %p238, %p239
    %s242 = sadd.s32 %s241, 1
    %p245 = scmp.eq.s32.totalorder %s20, 3
    %p246 = scmp.ne.s32.totalorder %s241, %s243
    %p247 = scmp.eq.s32.totalorder %s20, 0
    %p248 = por %p246, %p247
    %p249 = scmp.ne.s32.totalorder %s241, %s243
    %p250 = scmp.eq.s32.totalorder %s25, 3
    %p251 = por %p249, %p250
    %p252 = scmp.ne.s32.totalorder %s243, %s244
    %p253 = scmp.eq.s32.totalorder %s25, 0
    %p254 = por %p252, %p253
    %p255 = scmp.ne.s32.totalorder %s243, %s244
    %p256 = scmp.eq.s32.totalorder %s26, 3
    %p257 = por %p255, %p256
    %p259 = scmp.ne.s32.totalorder %s244, %s258
    %p260 = scmp.eq.s32.totalorder %s26, 0
    %p261 = por %p259, %p260
    %s263 = sadd.s32 %s262, 1
    %p266 = scmp.eq.s32.totalorder %s20, 3
    %p267 = scmp.ne.s32.totalorder %s262, %s264
    %p268 = scmp.eq.s32.totalorder %s20, 0
    %p269 = por %p267, %p268
    %p270 = scmp.ne.s32.totalorder %s262, %s264
    %p271 = scmp.eq.s32.totalorder %s25, 3
    %p272 = por %p270, %p271
    %p273 = scmp.ne.s32.totalorder %s264, %s265
    %p274 = scmp.eq.s32.totalorder %s25, 0
    %p275 = por %p273, %p274
    %p276 = scmp.ne.s32.totalorder %s264, %s265
    %p277 = scmp.eq.s32.totalorder %s26, 3
    %p278 = por %p276, %p277
    %p280 = scmp.ne.s32.totalorder %s265, %s279
    %p281 = scmp.eq.s32.totalorder %s26, 0
    %p282 = por %p280, %p281
    %s284 = sadd.s32 %s283, 1
    %p287 = scmp.eq.s32.totalorder %s20, 3
    %p288 = scmp.ne.s32.totalorder %s283, %s285
    %p289 = scmp.eq.s32.totalorder %s20, 0
    %p290 = por %p288, %p289
    %p291 = scmp.ne.s32.totalorder %s283, %s285
    %p292 = scmp.eq.s32.totalorder %s25, 3
    %p293 = por %p291, %p292
    %p294 = scmp.ne.s32.totalorder %s285, %s286
    %p295 = scmp.eq.s32.totalorder %s25, 0
    %p296 = por %p294, %p295
    %p297 = scmp.ne.s32.totalorder %s285, %s286
    %p298 = scmp.eq.s32.totalorder %s26, 3
    %p299 = por %p297, %p298
    %p301 = scmp.ne.s32.totalorder %s286, %s300
    %p302 = scmp.eq.s32.totalorder %s26, 0
    %p303 = por %p301, %p302
    %s304 = ssub.s32 %s27, %s39
    %s305 = ssub.s32 %s28, %s35
    %s306 = sor.u32 %s304, %s305
    %p307 = scmp.eq.s32.totalorder %s306, 0
    %s309 = sadd.s32 %s308, 1
    %s310 = scalar_select %p307, %s308, %s309
    %p313 = pneg %p307
    %p314 = scmp.eq.s32.totalorder %s20, 3
    %p315 = por %p313, %p314
    %p316 = scmp.ne.s32.totalorder %s308, %s311
    %p317 = scmp.eq.s32.totalorder %s20, 0
    %p318 = por %p316, %p317
    %p319 = scmp.ne.s32.totalorder %s308, %s311
    %p320 = scmp.eq.s32.totalorder %s25, 3
    %p321 = por %p319, %p320
    %p322 = scmp.ne.s32.totalorder %s311, %s312
    %p323 = scmp.eq.s32.totalorder %s25, 0
    %p324 = por %p322, %p323
    %p325 = scmp.ne.s32.totalorder %s311, %s312
    %p326 = scmp.eq.s32.totalorder %s26, 3
    %p327 = por %p325, %p326
    %p329 = scmp.ne.s32.totalorder %s312, %s328
    %p330 = scmp.eq.s32.totalorder %s26, 0
    %p331 = por %p329, %p330
    %s332 = ssub.s32 %s27, %s39
    %s333 = ssub.s32 %s28, %s35
    %s334 = sor.u32 %s332, %s333
    %p335 = scmp.eq.s32.totalorder %s334, 0
    %s337 = sadd.s32 %s336, 1
    %s338 = scalar_select %p335, %s336, %s337
    %p341 = pneg %p335
    %p342 = scmp.eq.s32.totalorder %s20, 3
    %p343 = por %p341, %p342
    %p344 = scmp.ne.s32.totalorder %s336, %s339
    %p345 = scmp.eq.s32.totalorder %s20, 0
    %p346 = por %p344, %p345
    %p347 = scmp.ne.s32.totalorder %s336, %s339
    %p348 = scmp.eq.s32.totalorder %s25, 3
    %p349 = por %p347, %p348
    %p350 = scmp.ne.s32.totalorder %s339, %s340
    %p351 = scmp.eq.s32.totalorder %s25, 0
    %p352 = por %p350, %p351
    %p353 = scmp.ne.s32.totalorder %s339, %s340
    %p354 = scmp.eq.s32.totalorder %s26, 3
    %p355 = por %p353, %p354
    %p357 = scmp.ne.s32.totalorder %s340, %s356
    %p358 = scmp.eq.s32.totalorder %s26, 0
    %p359 = por %p357, %p358
    %p360 = scmp.le.s32.totalorder 1, %s20
    %p361 = scmp.lt.s32.totalorder %s20, 5
    %p362 = pnand %p360, %p361
    %p363 = pneg %p362
    // Predicated region
    $region9: #{tpu_custom_call.1} parent=5 // pred_check
      _
    $region10: #{tpu_custom_call.1} parent=5 // pred_check_branch
      %365 = sbr.rel (%p362) target = $region12
    $region11: #{tpu_custom_call.1} parent=5 // pred_region
      %s366 = ssub.s32 %s20, 1
      // Predicated region
      $region13: #{tpu_custom_call.1} parent=11 // pred_check
        %p367 = pneg %p107
      $region14: #{tpu_custom_call.1} parent=11 // pred_check_branch
        %369 = sbr.rel (%p367) target = $region16
      $region15: #{tpu_custom_call.1} parent=11 // pred_region
        _
      $region16: #{tpu_custom_call.1} parent=11 // pred_fallthru
        _
      // Predicated region
      $region17: #{tpu_custom_call.1} parent=11 // pred_check
        %p370 = pneg %p128
      $region18: #{tpu_custom_call.1} parent=11 // pred_check_branch
        %372 = sbr.rel (%p370) target = $region20
      $region19: #{tpu_custom_call.1} parent=11 // pred_region
        _
      $region20: #{tpu_custom_call.1} parent=11 // pred_fallthru
        _
      // Predicated region
      $region21: #{tpu_custom_call.1} parent=11 // pred_check
        %p373 = pneg %p149
      $region22: #{tpu_custom_call.1} parent=11 // pred_check_branch
        %375 = sbr.rel (%p373) target = $region24
      $region23: #{tpu_custom_call.1} parent=11 // pred_region
        _
      $region24: #{tpu_custom_call.1} parent=11 // pred_fallthru
        _
      // Predicated region
      $region25: #{tpu_custom_call.1} parent=11 // pred_check
        %p376 = pneg %p170
      $region26: #{tpu_custom_call.1} parent=11 // pred_check_branch
        %378 = sbr.rel (%p376) target = $region28
      $region27: #{tpu_custom_call.1} parent=11 // pred_region
        _
      $region28: #{tpu_custom_call.1} parent=11 // pred_fallthru
        _
      // Predicated region
      $region29: #{tpu_custom_call.1} parent=11 // pred_check
        %p379 = pneg %p191
      $region30: #{tpu_custom_call.1} parent=11 // pred_check_branch
        %381 = sbr.rel (%p379) target = $region32
      $region31: #{tpu_custom_call.1} parent=11 // pred_region
        _
      $region32: #{tpu_custom_call.1} parent=11 // pred_fallthru
        _
      // Predicated region
      $region33: #{tpu_custom_call.1} parent=11 // pred_check
        %p382 = pneg %p212
      $region34: #{tpu_custom_call.1} parent=11 // pred_check_branch
        %384 = sbr.rel (%p382) target = $region36
      $region35: #{tpu_custom_call.1} parent=11 // pred_region
        _
      $region36: #{tpu_custom_call.1} parent=11 // pred_fallthru
        _
      // Predicated region
      $region37: #{tpu_custom_call.1} parent=11 // pred_check
        %p385 = pneg %p233
      $region38: #{tpu_custom_call.1} parent=11 // pred_check_branch
        %387 = sbr.rel (%p385) target = $region40
      $region39: #{tpu_custom_call.1} parent=11 // pred_region
        _
      $region40: #{tpu_custom_call.1} parent=11 // pred_fallthru
        _
      // Predicated region
      $region41: #{tpu_custom_call.1} parent=11 // pred_check
        %p388 = pneg %p254
      $region42: #{tpu_custom_call.1} parent=11 // pred_check_branch
        %390 = sbr.rel (%p388) target = $region44
      $region43: #{tpu_custom_call.1} parent=11 // pred_region
        _
      $region44: #{tpu_custom_call.1} parent=11 // pred_fallthru
        _
      // Predicated region
      $region45: #{tpu_custom_call.1} parent=11 // pred_check
        %p391 = pneg %p275
      $region46: #{tpu_custom_call.1} parent=11 // pred_check_branch
        %393 = sbr.rel (%p391) target = $region48
      $region47: #{tpu_custom_call.1} parent=11 // pred_region
        _
      $region48: #{tpu_custom_call.1} parent=11 // pred_fallthru
        _
      // Predicated region
      $region49: #{tpu_custom_call.1} parent=11 // pred_check
        %p394 = pneg %p296
      $region50: #{tpu_custom_call.1} parent=11 // pred_check_branch
        %396 = sbr.rel (%p394) target = $region52
      $region51: #{tpu_custom_call.1} parent=11 // pred_region
        _
      $region52: #{tpu_custom_call.1} parent=11 // pred_fallthru
        _
    $region12: #{tpu_custom_call.1} parent=5 // pred_fallthru
      _
    %p397 = scmp.lt.s32.totalorder %s20, 4
    // Predicated region
    $region53: #{tpu_custom_call.1} parent=5 // pred_check
      %p398 = pneg %p397
    $region54: #{tpu_custom_call.1} parent=5 // pred_check_branch
      %400 = sbr.rel (%p398) target = $region56
    $region55: #{tpu_custom_call.1} parent=5 // pred_region
      // Predicated region
      $region57: #{tpu_custom_call.1} parent=55 // pred_check
        %p401 = pneg %p54
      $region58: #{tpu_custom_call.1} parent=55 // pred_check_branch
        %403 = sbr.rel (%p401) target = $region60
      $region59: #{tpu_custom_call.1} parent=55 // pred_region
        %s404 = smul.u32 4, %s28
        %p405 = scmp.lt.s32.totalorder %s27, 1
        %s406 = scalar_select %p405, %s27, 1
        %p407 = scmp.lt.s32.totalorder %s404, 7
        %s408 = scalar_select %p407, %s404, 7
        %s409 = smul.addr %s406, 8
        %s410 = sadd.s32 %s408, %s409
        %s411 = smul.addr %s410, 4
        %s412 = scalar_lea.vmem %s0, %s411
        %s413 = smul.u32 4, %s28
      $region60: #{tpu_custom_call.1} parent=55 // pred_fallthru
        _
      // Predicated region
      $region61: #{tpu_custom_call.1} parent=55 // pred_check
        %p414 = pneg %p80
      $region62: #{tpu_custom_call.1} parent=55 // pred_check_branch
        %416 = sbr.rel (%p414) target = $region64
      $region63: #{tpu_custom_call.1} parent=55 // pred_region
        %p417 = scmp.lt.s32.totalorder %s27, 1
        %s418 = scalar_select %p417, %s27, 1
        %s419 = smul.addr %s418, 4
        %s420 = scalar_lea.vmem %s1, %s419
      $region64: #{tpu_custom_call.1} parent=55 // pred_fallthru
        _
    $region56: #{tpu_custom_call.1} parent=5 // pred_fallthru
      _
    %p421 = scmp.le.s32.totalorder 1, %s20
    %p422 = scmp.lt.s32.totalorder %s20, 5
    %p423 = pnand %p421, %p422
    %p424 = pneg %p423
    // Predicated region
    $region65: #{tpu_custom_call.1} parent=5 // pred_check
      _
    $region66: #{tpu_custom_call.1} parent=5 // pred_check_branch
      %426 = sbr.rel (%p423) target = $region68
    $region67: #{tpu_custom_call.1} parent=5 // pred_region
      %s427 = ssub.s32 %s20, 1
      %s428 = smul.u32 4, %s30
      %p429 = scmp.lt.s32.totalorder %s29, 1
      %s430 = scalar_select %p429, %s29, 1
      %p431 = scmp.lt.s32.totalorder %s428, 7
      %s432 = scalar_select %p431, %s428, 7
      %s433 = smul.addr %s430, 8
      %s434 = sadd.s32 %s432, %s433
      %s435 = smul.addr %s434, 4
      %s436 = scalar_lea.vmem %s0, %s435
      %p437 = pneg %p60
      %p438 = pneg %p57
      %p439 = scmp.lt.s32.totalorder %s29, 1
      %s440 = scalar_select %p439, %s29, 1
      %s441 = smul.addr %s440, 4
      %s442 = scalar_lea.vmem %s1, %s441
      %p443 = pneg %p86
      %p444 = pneg %p83
      %p445 = pneg %p107
      %p446 = pneg %p104
      %p447 = pneg %p128
      %p448 = pneg %p125
      %p449 = pneg %p149
      %p450 = pneg %p146
      %p451 = pneg %p170
      %p452 = pneg %p167
      %p453 = pneg %p191
      %p454 = pneg %p188
      %p455 = pneg %p212
      %p456 = pneg %p209
      %p457 = pneg %p233
      %p458 = pneg %p230
      %p459 = pneg %p254
      %p460 = pneg %p251
      %p461 = pneg %p275
      %p462 = pneg %p272
      %p463 = pneg %p296
      %p464 = pneg %p293
      %p465 = pneg %p324
      %p466 = pneg %p321
      %s467 = smul.u32 4, %s30
      %p468 = scmp.lt.s32.totalorder %s29, 1
      %s469 = scalar_select %p468, %s29, 1
      %p470 = scmp.lt.s32.totalorder %s467, 7
      %s471 = scalar_select %p470, %s467, 7
      %s472 = smul.addr %s469, 8
      %s473 = sadd.s32 %s471, %s472
      %s474 = smul.addr %s473, 4
      %s475 = scalar_lea.vmem %s12, %s474
      %p476 = pneg %p352
      %p477 = pneg %p349
      %s478 = smul.u32 4, %s30
      %p479 = scmp.lt.s32.totalorder %s29, 1
      %s480 = scalar_select %p479, %s29, 1
      %p481 = scmp.lt.s32.totalorder %s478, 7
      %s482 = scalar_select %p481, %s478, 7
      %s483 = smul.addr %s480, 8
      %s484 = sadd.s32 %s482, %s483
      %s485 = smul.addr %s484, 4
      %s486 = scalar_lea.vmem %s13, %s485
      %s487 = smul.u32 4, %s30
      %p488 = scmp.lt.s32.totalorder %s29, 1
      %s489 = scalar_select %p488, %s29, 1
      %p490 = scmp.lt.s32.totalorder %s487, 7
      %s491 = scalar_select %p490, %s487, 7
      %s492 = smul.addr %s489, 8
      %s493 = sadd.s32 %s491, %s492
      %s494 = smul.addr %s493, 4
      %s495 = scalar_lea.vmem %s0, %s494
      %s496 = smul.u32 4, %s30
      %p497 = scmp.lt.s32.totalorder %s29, 1
      %s498 = scalar_select %p497, %s29, 1
      %s499 = smul.addr %s498, 4
      %s500 = scalar_lea.vmem %s1, %s499
      %s501 = smul.u32 4, %s30
      %p502 = scmp.lt.s32.totalorder %s29, 1
      %s503 = scalar_select %p502, %s29, 1
      %p504 = scmp.lt.s32.totalorder %s501, 7
      %s505 = scalar_select %p504, %s501, 7
      %s506 = smul.addr %s503, 8
      %s507 = sadd.s32 %s505, %s506
      %s508 = smul.addr %s507, 4
      %s509 = scalar_lea.vmem %s12, %s508
      %s510 = smul.u32 4, %s30
      %s511 = smul.u32 4, %s30
      %p512 = scmp.lt.s32.totalorder %s29, 1
      %s513 = scalar_select %p512, %s29, 1
      %p514 = scmp.lt.s32.totalorder %s511, 7
      %s515 = scalar_select %p514, %s511, 7
      %s516 = smul.addr %s513, 8
      %s517 = sadd.s32 %s515, %s516
      %s518 = smul.addr %s517, 4
      %s519 = scalar_lea.vmem %s13, %s518
      %s520 = smul.u32 4, %s30
      %v522 = vld [vmem:[%s495] sm:$0xf]
      %v523 = vld [vmem:[%s495 + $0x4] sm:$0xf]
      %v524 = vld [vmem:[%s495 + $0x8] sm:$0xf]
      %v525 = vld [vmem:[%s495 + $0xc] sm:$0xf]
      %v526 = vld [vmem:[%s500] sm:$0xf]
      %v527 = vld [vmem:[%s2] sm:$0xf]
      %v528 = vld [vmem:[%s2 + $0x4] sm:$0xf]
      %v529 = vld [vmem:[%s2 + $0x8] sm:$0xf]
      %v530 = vld [vmem:[%s2 + $0xc] sm:$0xf]
      %v531 = vld [vmem:[%s3] sm:$0x1]
      %v532 = vld [vmem:[%s4] sm:$0xf]
      %v533 = vld [vmem:[%s4 + $0x4] sm:$0xf]
      %v534 = vld [vmem:[%s5] sm:$0x1]
      %v535 = vld [vmem:[%s6] sm:$0xf]
      %v536 = vld [vmem:[%s6 + $0x4] sm:$0xf]
      %v537 = vld [vmem:[%s7] sm:$0x1]
      %v538 = vld [vmem:[%s8] sm:$0xf]
      %v539 = vld [vmem:[%s8 + $0x4] sm:$0xf]
      %v540 = vld [vmem:[%s8 + $0x8] sm:$0xf]
      %v541 = vld [vmem:[%s8 + $0xc] sm:$0xf]
      %v542 = vld [vmem:[%s9] sm:$0x1]
      %v544 = vperm.slane %v531, 0
      %v550 = vunpack.c.l.b16 %v522
      %v551 = vunpack.c.l.b16 %v523
      %v552 = vunpack.c.l.b16 %v524
      %v553 = vunpack.c.l.b16 %v525
      %v554 = vpack.c.b16 %v551, %v550
      %v555 = vpack.c.b16 %v553, %v552
      %v560 = vunpack.c.l.b16 %v527
      %v561 = vunpack.c.l.b16 %v528
      %v562 = vunpack.c.l.b16 %v529
      %v563 = vunpack.c.l.b16 %v530
      %v564 = vpack.c.b16 %v561, %v560
      %v565 = vpack.c.b16 %v563, %v562
      %vm568 = vcmask 261120
      %v570 = vsel %vm568, %v554, 0
      %v573 = vsel %vm568, %v555, 0
      %575 = vmatpush.bf16.msra.mxu0 0
      %576 = vmatpush.bf16.msra.mxu0 0
      %577 = vmatpush.bf16.msra.mxu0 0
      %578 = vmatpush.bf16.msra.mxu0 0
      %579 = vmatpush.bf16.msra.mxu0 0
      %580 = vmatpush.bf16.msra.mxu0 0
      %581 = vmatpush.bf16.msra.mxu0 %v565
      %582 = vmatpush.bf16.msra.mxu0 %v564
      %583 = vmatmul.bf16.gmra.mxu0 %v570
      %v584 = vpop.f32.mrf.mxu0
      %v585 = vadd.f32 %v544, %v584
      %v586 = vpop.f32.mrf.mxu0
      %v587 = vadd.f32 %v544, %v586
      %588 = vmatmul.bf16.gmra.mxu0 %v573
      %v589 = vpop.f32.mrf.mxu0
      %v590 = vadd.f32 %v544, %v589
      %v591 = vpop.f32.mrf.mxu0
      %v592 = vadd.f32 %v544, %v591
      %593 = vdwg.mxu0
      %v594 = vpack.c.bf16 %v585, %v585
      %v595 = vpack.c.bf16 %v587, %v587
      %v596 = vpack.c.bf16 %v590, %v590
      %v597 = vpack.c.bf16 %v592, %v592
      %v599 = vperm.slane %v534, 0
      %v603 = vunpack.c.l.b16 %v532
      %v604 = vunpack.c.l.b16 %v533
      %v605 = vpack.c.b16 %v604, %v603
      %vm607 = vcmask 130048
      %v609 = vsel %vm607, %v526, 0
      %611 = vmatpush.bf16.msra.mxu0 0
      %612 = vmatpush.bf16.msra.mxu0 0
      %613 = vmatpush.bf16.msra.mxu0 0
      %614 = vmatpush.bf16.msra.mxu0 0
      %615 = vmatpush.bf16.msra.mxu0 0
      %616 = vmatpush.bf16.msra.mxu0 0
      %617 = vmatpush.bf16.msra.mxu0 0
      %618 = vmatpush.bf16.msra.mxu0 %v605
      %619 = vmatmul.bf16.gmra.mxu0 %v609
      %v620 = vpop.f32.mrf.mxu0
      %v621 = vadd.f32 %v599, %v620
      %v622 = vpop.f32.mrf.mxu0
      %623 = vdwg.mxu0
      %v624 = vpack.c.bf16 %v621, %v621
      %v626 = vperm.slane %v537, 0
      %v630 = vunpack.c.l.b16 %v535
      %v631 = vunpack.c.l.b16 %v536
      %v632 = vpack.c.b16 %v631, %v630
      %634 = vmatpush.bf16.msra.mxu0 0
      %635 = vmatpush.bf16.msra.mxu0 0
      %636 = vmatpush.bf16.msra.mxu0 0
      %637 = vmatpush.bf16.msra.mxu0 0
      %638 = vmatpush.bf16.msra.mxu0 0
      %639 = vmatpush.bf16.msra.mxu0 0
      %640 = vmatpush.bf16.msra.mxu0 0
      %641 = vmatpush.bf16.msra.mxu0 %v632
      %642 = vmatmul.bf16.gmra.mxu0 %v609
      %v643 = vpop.f32.mrf.mxu0
      %v644 = vadd.f32 %v626, %v643
      %v645 = vpop.f32.mrf.mxu0
      %646 = vdwg.mxu0
      %v647 = vpack.c.bf16 %v644, %v644
      %v652 = vunpack.c.l.b16 %v594
      %v653 = vunpack.c.l.b16 %v595
      %v654 = vunpack.c.l.b16 %v596
      %v655 = vunpack.c.l.b16 %v597
      %v656 = vpack.c.b16 %v653, %v652
      %v657 = vpack.c.b16 %v655, %v654
      %vm658 = vcmask 64512
      %v660 = vsel %vm658, %v656, 0
      %v663 = vsel %vm658, %v657, 0
      %v666 = vsel %vm658, %v624, 0
      %668 = vmatpush.bf16.xpose.msra.mxu0 0
      %669 = vmatpush.bf16.xpose.msra.mxu0 0
      %670 = vmatpush.bf16.xpose.msra.mxu0 0
      %671 = vmatpush.bf16.xpose.msra.mxu0 0
      %672 = vmatpush.bf16.xpose.msra.mxu0 0
      %673 = vmatpush.bf16.xpose.msra.mxu0 0
      %674 = vmatpush.bf16.xpose.msra.mxu0 0
      %675 = vmatpush.bf16.xpose.msra.mxu0 %v666
      %676 = vmatmul.bf16.gmra.mxu0 %v660
      %v677 = vpop.f32.mrf.mxu0
      %v678 = vadd.f32 0.0, %v677
      %v679 = vpop.f32.mrf.mxu0
      %v680 = vadd.f32 0.0, %v679
      %681 = vmatmul.bf16.gmra.mxu0 %v663
      %v682 = vpop.f32.mrf.mxu0
      %v683 = vadd.f32 0.0, %v682
      %v684 = vpop.f32.mrf.mxu0
      %v685 = vadd.f32 0.0, %v684
      %686 = vdwg.mxu0
      %v687 = vsel %vm658, %v678, -inf
      %688 = vmax.xlane.f32.xlu0 %v687
      %v689 = vpop.xlane.xlu0 %688
      %v690 = vsel %vm658, %v680, -inf
      %691 = vmax.xlane.f32.xlu0 %v690
      %v692 = vpop.xlane.xlu0 %691
      %v693 = vsel %vm658, %v683, -inf
      %694 = vmax.xlane.f32.xlu0 %v693
      %v695 = vpop.xlane.xlu0 %694
      %v696 = vsel %vm658, %v685, -inf
      %697 = vmax.xlane.f32.xlu0 %v696
      %v698 = vpop.xlane.xlu0 %697
      %v699 = vsub.f32 %v678, %v689
      %v700 = vsub.f32 %v680, %v692
      %v701 = vsub.f32 %v683, %v695
      %v702 = vsub.f32 %v685, %v698
      %v703 = vmul.f32 %v699, 1.442695
      %v704 = vpow.pop %v703
      %v705 = vmul.f32 %v700, 1.442695
      %v706 = vpow.pop %v705
      %v707 = vmul.f32 %v701, 1.442695
      %v708 = vpow.pop %v707
      %v709 = vmul.f32 %v702, 1.442695
      %v710 = vpow.pop %v709
      %v711 = vsel %vm658, %v704, 0.0
      %712 = vadd.xlane.f32.xlu0 %v711
      %v713 = vpop.xlane.xlu0 %712
      %v714 = vsel %vm658, %v706, 0.0
      %715 = vadd.xlane.f32.xlu0 %v714
      %v716 = vpop.xlane.xlu0 %715
      %v717 = vsel %vm658, %v708, 0.0
      %718 = vadd.xlane.f32.xlu0 %v717
      %v719 = vpop.xlane.xlu0 %718
      %v720 = vsel %vm658, %v710, 0.0
      %721 = vadd.xlane.f32.xlu0 %v720
      %v722 = vpop.xlane.xlu0 %721
      %v723 = vrcp.pop %v713
      %v724 = vrcp.pop %v716
      %v725 = vrcp.pop %v719
      %v726 = vrcp.pop %v722
      %v727 = vmul.f32 %v704, %v723
      %v728 = vmul.f32 %v706, %v724
      %v729 = vmul.f32 %v708, %v725
      %v730 = vmul.f32 %v710, %v726
      %v731 = vpack.c.bf16 %v728, %v727
      %v732 = vpack.c.bf16 %v730, %v729
      %v734 = vsel %vm658, %v731, 0
      %v737 = vsel %vm658, %v732, 0
      %vm739 = vcmask 1043456
      %v741 = vsel %vm739, %v647, 0
      %743 = vmatpush.bf16.msra.mxu0 0
      %744 = vmatpush.bf16.msra.mxu0 0
      %745 = vmatpush.bf16.msra.mxu0 0
      %746 = vmatpush.bf16.msra.mxu0 0
      %747 = vmatpush.bf16.msra.mxu0 0
      %748 = vmatpush.bf16.msra.mxu0 0
      %749 = vmatpush.bf16.msra.mxu0 0
      %750 = vmatpush.bf16.msra.mxu0 %v741
      %751 = vmatmul.bf16.gmra.mxu0 %v734
      %v752 = vpop.f32.mrf.mxu0
      %v753 = vadd.f32 0.0, %v752
      %v754 = vpop.f32.mrf.mxu0
      %v755 = vadd.f32 0.0, %v754
      %756 = vmatmul.bf16.gmra.mxu0 %v737
      %v757 = vpop.f32.mrf.mxu0
      %v758 = vadd.f32 0.0, %v757
      %v759 = vpop.f32.mrf.mxu0
      %v760 = vadd.f32 0.0, %v759
      %761 = vdwg.mxu0
      %762 = vrot.lane.b32.xlu0 %v656, 120
      %v763 = vpop.permute.xlu0 %762
      %764 = vrot.lane.b32.xlu0 %v657, 120
      %v765 = vpop.permute.xlu0 %764
      %v767 = vunpack.c.l.b16 %v624
      %v768 = vpack.c.b16 %v767, %v767
      %769 = vrot.lane.b32.xlu0 %v768, 120
      %v770 = vpop.permute.xlu0 %769
      %v772 = vsel %vm658, %v763, 0
      %v775 = vsel %vm658, %v765, 0
      %v778 = vsel %vm658, %v770, 0
      %780 = vmatpush.bf16.xpose.msra.mxu0 0
      %781 = vmatpush.bf16.xpose.msra.mxu0 0
      %782 = vmatpush.bf16.xpose.msra.mxu0 0
      %783 = vmatpush.bf16.xpose.msra.mxu0 0
      %784 = vmatpush.bf16.xpose.msra.mxu0 0
      %785 = vmatpush.bf16.xpose.msra.mxu0 0
      %786 = vmatpush.bf16.xpose.msra.mxu0 0
      %787 = vmatpush.bf16.xpose.msra.mxu0 %v778
      %788 = vmatmul.bf16.gmra.mxu0 %v772
      %v789 = vpop.f32.mrf.mxu0
      %v790 = vadd.f32 0.0, %v789
      %v791 = vpop.f32.mrf.mxu0
      %v792 = vadd.f32 0.0, %v791
      %793 = vmatmul.bf16.gmra.mxu0 %v775
      %v794 = vpop.f32.mrf.mxu0
      %v795 = vadd.f32 0.0, %v794
      %v796 = vpop.f32.mrf.mxu0
      %v797 = vadd.f32 0.0, %v796
      %798 = vdwg.mxu0
      %v799 = vsel %vm658, %v790, -inf
      %800 = vmax.xlane.f32.xlu0 %v799
      %v801 = vpop.xlane.xlu0 %800
      %v802 = vsel %vm658, %v792, -inf
      %803 = vmax.xlane.f32.xlu0 %v802
      %v804 = vpop.xlane.xlu0 %803
      %v805 = vsel %vm658, %v795, -inf
      %806 = vmax.xlane.f32.xlu0 %v805
      %v807 = vpop.xlane.xlu0 %806
      %v808 = vsel %vm658, %v797, -inf
      %809 = vmax.xlane.f32.xlu0 %v808
      %v810 = vpop.xlane.xlu0 %809
      %v811 = vsub.f32 %v790, %v801
      %v812 = vsub.f32 %v792, %v804
      %v813 = vsub.f32 %v795, %v807
      %v814 = vsub.f32 %v797, %v810
      %v815 = vmul.f32 %v811, 1.442695
      %v816 = vpow.pop %v815
      %v817 = vmul.f32 %v812, 1.442695
      %v818 = vpow.pop %v817
      %v819 = vmul.f32 %v813, 1.442695
      %v820 = vpow.pop %v819
      %v821 = vmul.f32 %v814, 1.442695
      %v822 = vpow.pop %v821
      %v823 = vsel %vm658, %v816, 0.0
      %824 = vadd.xlane.f32.xlu0 %v823
      %v825 = vpop.xlane.xlu0 %824
      %v826 = vsel %vm658, %v818, 0.0
      %827 = vadd.xlane.f32.xlu0 %v826
      %v828 = vpop.xlane.xlu0 %827
      %v829 = vsel %vm658, %v820, 0.0
      %830 = vadd.xlane.f32.xlu0 %v829
      %v831 = vpop.xlane.xlu0 %830
      %v832 = vsel %vm658, %v822, 0.0
      %833 = vadd.xlane.f32.xlu0 %v832
      %v834 = vpop.xlane.xlu0 %833
      %v835 = vrcp.pop %v825
      %v836 = vrcp.pop %v828
      %v837 = vrcp.pop %v831
      %v838 = vrcp.pop %v834
      %v839 = vmul.f32 %v816, %v835
      %v840 = vmul.f32 %v818, %v836
      %v841 = vmul.f32 %v820, %v837
      %v842 = vmul.f32 %v822, %v838
      %v843 = vpack.c.bf16 %v840, %v839
      %v844 = vpack.c.bf16 %v842, %v841
      %v846 = vunpack.c.l.b16 %v647
      %v847 = vpack.c.b16 %v846, %v846
      %848 = vrot.lane.b32.xlu0 %v847, 120
      %v849 = vpop.permute.xlu0 %848
      %v851 = vsel %vm658, %v843, 0
      %v854 = vsel %vm658, %v844, 0
      %v857 = vsel %vm739, %v849, 0
      %859 = vmatpush.bf16.msra.mxu0 0
      %860 = vmatpush.bf16.msra.mxu0 0
      %861 = vmatpush.bf16.msra.mxu0 0
      %862 = vmatpush.bf16.msra.mxu0 0
      %863 = vmatpush.bf16.msra.mxu0 0
      %864 = vmatpush.bf16.msra.mxu0 0
      %865 = vmatpush.bf16.msra.mxu0 0
      %866 = vmatpush.bf16.msra.mxu0 %v857
      %867 = vmatmul.bf16.gmra.mxu0 %v851
      %v868 = vpop.f32.mrf.mxu0
      %v869 = vadd.f32 0.0, %v868
      %v870 = vpop.f32.mrf.mxu0
      %v871 = vadd.f32 0.0, %v870
      %872 = vmatmul.bf16.gmra.mxu0 %v854
      %v873 = vpop.f32.mrf.mxu0
      %v874 = vadd.f32 0.0, %v873
      %v875 = vpop.f32.mrf.mxu0
      %v876 = vadd.f32 0.0, %v875
      %877 = vdwg.mxu0
      %878 = vrot.lane.b32.xlu0 %v656, 112
      %v879 = vpop.permute.xlu0 %878
      %880 = vrot.lane.b32.xlu0 %v657, 112
      %v881 = vpop.permute.xlu0 %880
      %882 = vrot.lane.b32.xlu0 %v768, 112
      %v883 = vpop.permute.xlu0 %882
      %v885 = vsel %vm658, %v879, 0
      %v888 = vsel %vm658, %v881, 0
      %v891 = vsel %vm658, %v883, 0
      %893 = vmatpush.bf16.xpose.msra.mxu0 0
      %894 = vmatpush.bf16.xpose.msra.mxu0 0
      %895 = vmatpush.bf16.xpose.msra.mxu0 0
      %896 = vmatpush.bf16.xpose.msra.mxu0 0
      %897 = vmatpush.bf16.xpose.msra.mxu0 0
      %898 = vmatpush.bf16.xpose.msra.mxu0 0
      %899 = vmatpush.bf16.xpose.msra.mxu0 0
      %900 = vmatpush.bf16.xpose.msra.mxu0 %v891
      %901 = vmatmul.bf16.gmra.mxu0 %v885
      %v902 = vpop.f32.mrf.mxu0
      %v903 = vadd.f32 0.0, %v902
      %v904 = vpop.f32.mrf.mxu0
      %v905 = vadd.f32 0.0, %v904
      %906 = vmatmul.bf16.gmra.mxu0 %v888
      %v907 = vpop.f32.mrf.mxu0
      %v908 = vadd.f32 0.0, %v907
      %v909 = vpop.f32.mrf.mxu0
      %v910 = vadd.f32 0.0, %v909
      %911 = vdwg.mxu0
      %v912 = vsel %vm658, %v903, -inf
      %913 = vmax.xlane.f32.xlu0 %v912
      %v914 = vpop.xlane.xlu0 %913
      %v915 = vsel %vm658, %v905, -inf
      %916 = vmax.xlane.f32.xlu0 %v915
      %v917 = vpop.xlane.xlu0 %916
      %v918 = vsel %vm658, %v908, -inf
      %919 = vmax.xlane.f32.xlu0 %v918
      %v920 = vpop.xlane.xlu0 %919
      %v921 = vsel %vm658, %v910, -inf
      %922 = vmax.xlane.f32.xlu0 %v921
      %v923 = vpop.xlane.xlu0 %922
      %v924 = vsub.f32 %v903, %v914
      %v925 = vsub.f32 %v905, %v917
      %v926 = vsub.f32 %v908, %v920
      %v927 = vsub.f32 %v910, %v923
      %v928 = vmul.f32 %v924, 1.442695
      %v929 = vpow.pop %v928
      %v930 = vmul.f32 %v925, 1.442695
      %v931 = vpow.pop %v930
      %v932 = vmul.f32 %v926, 1.442695
      %v933 = vpow.pop %v932
      %v934 = vmul.f32 %v927, 1.442695
      %v935 = vpow.pop %v934
      %v936 = vsel %vm658, %v929, 0.0
      %937 = vadd.xlane.f32.xlu0 %v936
      %v938 = vpop.xlane.xlu0 %937
      %v939 = vsel %vm658, %v931, 0.0
      %940 = vadd.xlane.f32.xlu0 %v939
      %v941 = vpop.xlane.xlu0 %940
      %v942 = vsel %vm658, %v933, 0.0
      %943 = vadd.xlane.f32.xlu0 %v942
      %v944 = vpop.xlane.xlu0 %943
      %v945 = vsel %vm658, %v935, 0.0
      %946 = vadd.xlane.f32.xlu0 %v945
      %v947 = vpop.xlane.xlu0 %946
      %v948 = vrcp.pop %v938
      %v949 = vrcp.pop %v941
      %v950 = vrcp.pop %v944
      %v951 = vrcp.pop %v947
      %v952 = vmul.f32 %v929, %v948
      %v953 = vmul.f32 %v931, %v949
      %v954 = vmul.f32 %v933, %v950
      %v955 = vmul.f32 %v935, %v951
      %v956 = vpack.c.bf16 %v953, %v952
      %v957 = vpack.c.bf16 %v955, %v954
      %958 = vrot.lane.b32.xlu0 %v847, 112
      %v959 = vpop.permute.xlu0 %958
      %v961 = vsel %vm658, %v956, 0
      %v964 = vsel %vm658, %v957, 0
      %v967 = vsel %vm739, %v959, 0
      %969 = vmatpush.bf16.msra.mxu0 0
      %970 = vmatpush.bf16.msra.mxu0 0
      %971 = vmatpush.bf16.msra.mxu0 0
      %972 = vmatpush.bf16.msra.mxu0 0
      %973 = vmatpush.bf16.msra.mxu0 0
      %974 = vmatpush.bf16.msra.mxu0 0
      %975 = vmatpush.bf16.msra.mxu0 0
      %976 = vmatpush.bf16.msra.mxu0 %v967
      %977 = vmatmul.bf16.gmra.mxu0 %v961
      %v978 = vpop.f32.mrf.mxu0
      %v979 = vadd.f32 0.0, %v978
      %v980 = vpop.f32.mrf.mxu0
      %v981 = vadd.f32 0.0, %v980
      %982 = vmatmul.bf16.gmra.mxu0 %v964
      %v983 = vpop.f32.mrf.mxu0
      %v984 = vadd.f32 0.0, %v983
      %v985 = vpop.f32.mrf.mxu0
      %v986 = vadd.f32 0.0, %v985
      %987 = vdwg.mxu0
      %988 = vrot.lane.b32.xlu0 %v656, 104
      %v989 = vpop.permute.xlu0 %988
      %990 = vrot.lane.b32.xlu0 %v657, 104
      %v991 = vpop.permute.xlu0 %990
      %992 = vrot.lane.b32.xlu0 %v768, 104
      %v993 = vpop.permute.xlu0 %992
      %v995 = vsel %vm658, %v989, 0
      %v998 = vsel %vm658, %v991, 0
      %v1001 = vsel %vm658, %v993, 0
      %1003 = vmatpush.bf16.xpose.msra.mxu0 0
      %1004 = vmatpush.bf16.xpose.msra.mxu0 0
      %1005 = vmatpush.bf16.xpose.msra.mxu0 0
      %1006 = vmatpush.bf16.xpose.msra.mxu0 0
      %1007 = vmatpush.bf16.xpose.msra.mxu0 0
      %1008 = vmatpush.bf16.xpose.msra.mxu0 0
      %1009 = vmatpush.bf16.xpose.msra.mxu0 0
      %1010 = vmatpush.bf16.xpose.msra.mxu0 %v1001
      %1011 = vmatmul.bf16.gmra.mxu0 %v995
      %v1012 = vpop.f32.mrf.mxu0
      %v1013 = vadd.f32 0.0, %v1012
      %v1014 = vpop.f32.mrf.mxu0
      %v1015 = vadd.f32 0.0, %v1014
      %1016 = vmatmul.bf16.gmra.mxu0 %v998
      %v1017 = vpop.f32.mrf.mxu0
      %v1018 = vadd.f32 0.0, %v1017
      %v1019 = vpop.f32.mrf.mxu0
      %v1020 = vadd.f32 0.0, %v1019
      %1021 = vdwg.mxu0
      %v1022 = vsel %vm658, %v1013, -inf
      %1023 = vmax.xlane.f32.xlu0 %v1022
      %v1024 = vpop.xlane.xlu0 %1023
      %v1025 = vsel %vm658, %v1015, -inf
      %1026 = vmax.xlane.f32.xlu0 %v1025
      %v1027 = vpop.xlane.xlu0 %1026
      %v1028 = vsel %vm658, %v1018, -inf
      %1029 = vmax.xlane.f32.xlu0 %v1028
      %v1030 = vpop.xlane.xlu0 %1029
      %v1031 = vsel %vm658, %v1020, -inf
      %1032 = vmax.xlane.f32.xlu0 %v1031
      %v1033 = vpop.xlane.xlu0 %1032
      %v1034 = vsub.f32 %v1013, %v1024
      %v1035 = vsub.f32 %v1015, %v1027
      %v1036 = vsub.f32 %v1018, %v1030
      %v1037 = vsub.f32 %v1020, %v1033
      %v1038 = vmul.f32 %v1034, 1.442695
      %v1039 = vpow.pop %v1038
      %v1040 = vmul.f32 %v1035, 1.442695
      %v1041 = vpow.pop %v1040
      %v1042 = vmul.f32 %v1036, 1.442695
      %v1043 = vpow.pop %v1042
      %v1044 = vmul.f32 %v1037, 1.442695
      %v1045 = vpow.pop %v1044
      %v1046 = vsel %vm658, %v1039, 0.0
      %1047 = vadd.xlane.f32.xlu0 %v1046
      %v1048 = vpop.xlane.xlu0 %1047
      %v1049 = vsel %vm658, %v1041, 0.0
      %1050 = vadd.xlane.f32.xlu0 %v1049
      %v1051 = vpop.xlane.xlu0 %1050
      %v1052 = vsel %vm658, %v1043, 0.0
      %1053 = vadd.xlane.f32.xlu0 %v1052
      %v1054 = vpop.xlane.xlu0 %1053
      %v1055 = vsel %vm658, %v1045, 0.0
      %1056 = vadd.xlane.f32.xlu0 %v1055
      %v1057 = vpop.xlane.xlu0 %1056
      %v1058 = vrcp.pop %v1048
      %v1059 = vrcp.pop %v1051
      %v1060 = vrcp.pop %v1054
      %v1061 = vrcp.pop %v1057
      %v1062 = vmul.f32 %v1039, %v1058
      %v1063 = vmul.f32 %v1041, %v1059
      %v1064 = vmul.f32 %v1043, %v1060
      %v1065 = vmul.f32 %v1045, %v1061
      %v1066 = vpack.c.bf16 %v1063, %v1062
      %v1067 = vpack.c.bf16 %v1065, %v1064
      %1068 = vrot.lane.b32.xlu0 %v847, 104
      %v1069 = vpop.permute.xlu0 %1068
      %v1071 = vsel %vm658, %v1066, 0
      %v1074 = vsel %vm658, %v1067, 0
      %v1077 = vsel %vm739, %v1069, 0
      %1079 = vmatpush.bf16.msra.mxu0 0
      %1080 = vmatpush.bf16.msra.mxu0 0
      %1081 = vmatpush.bf16.msra.mxu0 0
      %1082 = vmatpush.bf16.msra.mxu0 0
      %1083 = vmatpush.bf16.msra.mxu0 0
      %1084 = vmatpush.bf16.msra.mxu0 0
      %1085 = vmatpush.bf16.msra.mxu0 0
      %1086 = vmatpush.bf16.msra.mxu0 %v1077
      %1087 = vmatmul.bf16.gmra.mxu0 %v1071
      %v1088 = vpop.f32.mrf.mxu0
      %v1089 = vadd.f32 0.0, %v1088
      %v1090 = vpop.f32.mrf.mxu0
      %v1091 = vadd.f32 0.0, %v1090
      %1092 = vmatmul.bf16.gmra.mxu0 %v1074
      %v1093 = vpop.f32.mrf.mxu0
      %v1094 = vadd.f32 0.0, %v1093
      %v1095 = vpop.f32.mrf.mxu0
      %v1096 = vadd.f32 0.0, %v1095
      %1097 = vdwg.mxu0
      %1102 = vrot.lane.b32.xlu0 %v869, 8
      %v1103 = vpop.permute.xlu0 %1102
      %1104 = vrot.lane.b32.xlu0 %v871, 8
      %v1105 = vpop.permute.xlu0 %1104
      %1106 = vrot.lane.b32.xlu0 %v874, 8
      %v1107 = vpop.permute.xlu0 %1106
      %1108 = vrot.lane.b32.xlu0 %v876, 8
      %v1109 = vpop.permute.xlu0 %1108
      %1118 = vrot.lane.b32.xlu0 %v979, 16
      %v1119 = vpop.permute.xlu0 %1118
      %1120 = vrot.lane.b32.xlu0 %v981, 16
      %v1121 = vpop.permute.xlu0 %1120
      %1122 = vrot.lane.b32.xlu0 %v984, 16
      %v1123 = vpop.permute.xlu0 %1122
      %1124 = vrot.lane.b32.xlu0 %v986, 16
      %v1125 = vpop.permute.xlu0 %1124
      %1134 = vrot.lane.b32.xlu0 %v1089, 24
      %v1135 = vpop.permute.xlu0 %1134
      %1136 = vrot.lane.b32.xlu0 %v1091, 24
      %v1137 = vpop.permute.xlu0 %1136
      %1138 = vrot.lane.b32.xlu0 %v1094, 24
      %v1139 = vpop.permute.xlu0 %1138
      %1140 = vrot.lane.b32.xlu0 %v1096, 24
      %v1141 = vpop.permute.xlu0 %1140
      %v1146 = vsel %vm658, %v753, %v1103
      %v1147 = vsel %vm658, %v755, %v1105
      %v1148 = vsel %vm658, %v758, %v1107
      %v1149 = vsel %vm658, %v760, %v1109
      %v1150 = vsel %vm607, %v1146, %v1119
      %v1151 = vsel %vm607, %v1147, %v1121
      %v1152 = vsel %vm607, %v1148, %v1123
      %v1153 = vsel %vm607, %v1149, %v1125
      %vm1154 = vcmask 195584
      %v1155 = vsel %vm1154, %v1150, %v1135
      %v1156 = vsel %vm1154, %v1151, %v1137
      %v1157 = vsel %vm1154, %v1152, %v1139
      %v1158 = vsel %vm1154, %v1153, %v1141
      %v1159 = vpack.c.bf16 %v1156, %v1155
      %v1160 = vpack.c.bf16 %v1158, %v1157
      %v1162 = vperm.slane %v542, 0
      %v1168 = vunpack.c.l.b16 %v538
      %v1169 = vunpack.c.l.b16 %v539
      %v1170 = vunpack.c.l.b16 %v540
      %v1171 = vunpack.c.l.b16 %v541
      %v1172 = vpack.c.b16 %v1169, %v1168
      %v1173 = vpack.c.b16 %v1171, %v1170
      %v1177 = vsel %vm568, %v1159, 0
      %v1180 = vsel %vm568, %v1160, 0
      %1182 = vmatpush.bf16.msra.mxu0 0
      %1183 = vmatpush.bf16.msra.mxu0 0
      %1184 = vmatpush.bf16.msra.mxu0 0
      %1185 = vmatpush.bf16.msra.mxu0 0
      %1186 = vmatpush.bf16.msra.mxu0 0
      %1187 = vmatpush.bf16.msra.mxu0 0
      %1188 = vmatpush.bf16.msra.mxu0 %v1173
      %1189 = vmatpush.bf16.msra.mxu0 %v1172
      %1190 = vmatmul.bf16.gmra.mxu0 %v1177
      %v1191 = vpop.f32.mrf.mxu0
      %v1192 = vadd.f32 %v1162, %v1191
      %v1193 = vpop.f32.mrf.mxu0
      %v1194 = vadd.f32 %v1162, %v1193
      %1195 = vmatmul.bf16.gmra.mxu0 %v1180
      %v1196 = vpop.f32.mrf.mxu0
      %v1197 = vadd.f32 %v1162, %v1196
      %v1198 = vpop.f32.mrf.mxu0
      %v1199 = vadd.f32 %v1162, %v1198
      %1200 = vdwg.mxu0
      %v1201 = vunpack.c.l.bf16 %v522
      %v1202 = vunpack.c.l.bf16 %v523
      %v1203 = vunpack.c.l.bf16 %v524
      %v1204 = vunpack.c.l.bf16 %v525
      %v1205 = vadd.f32 %v1192, %v1201
      %v1206 = vadd.f32 %v1194, %v1202
      %v1207 = vadd.f32 %v1197, %v1203
      %v1208 = vadd.f32 %v1199, %v1204
      %v1209 = vpack.c.bf16 %v1205, %v1205
      %v1210 = vpack.c.bf16 %v1206, %v1206
      %v1211 = vpack.c.bf16 %v1207, %v1207
      %v1212 = vpack.c.bf16 %v1208, %v1208
      %vm1213 = vcmask 257024
      %1214 = vst.msk [vmem:[%s509] sm:$0xf] %vm1213, %v1209
      %1215 = vst.msk [vmem:[%s509 + $0x4] sm:$0xf] %vm1213, %v1210
      %1216 = vst.msk [vmem:[%s509 + $0x8] sm:$0xf] %vm1213, %v1211
      %1217 = vst.msk [vmem:[%s509 + $0xc] sm:$0xf] %vm1213, %v1212
      %v1218 = vld [vmem:[%s10] sm:$0xf]
      %v1219 = vld [vmem:[%s10 + $0x4] sm:$0xf]
      %v1220 = vld [vmem:[%s10 + $0x8] sm:$0xf]
      %v1221 = vld [vmem:[%s10 + $0xc] sm:$0xf]
      %v1222 = vld [vmem:[%s11] sm:$0x1]
      %v1224 = vperm.slane %v1222, 0
      %v1230 = vunpack.c.l.b16 %v1209
      %v1231 = vunpack.c.l.b16 %v1210
      %v1232 = vunpack.c.l.b16 %v1211
      %v1233 = vunpack.c.l.b16 %v1212
      %v1234 = vpack.c.b16 %v1231, %v1230
      %v1235 = vpack.c.b16 %v1233, %v1232
      %v1240 = vunpack.c.l.b16 %v1218
      %v1241 = vunpack.c.l.b16 %v1219
      %v1242 = vunpack.c.l.b16 %v1220
      %v1243 = vunpack.c.l.b16 %v1221
      %v1244 = vpack.c.b16 %v1241, %v1240
      %v1245 = vpack.c.b16 %v1243, %v1242
      %v1249 = vsel %vm568, %v1234, 0
      %v1252 = vsel %vm568, %v1235, 0
      %1254 = vmatpush.bf16.msra.mxu0 0
      %1255 = vmatpush.bf16.msra.mxu0 0
      %1256 = vmatpush.bf16.msra.mxu0 0
      %1257 = vmatpush.bf16.msra.mxu0 0
      %1258 = vmatpush.bf16.msra.mxu0 0
      %1259 = vmatpush.bf16.msra.mxu0 0
      %1260 = vmatpush.bf16.msra.mxu0 %v1245
      %1261 = vmatpush.bf16.msra.mxu0 %v1244
      %1262 = vmatmul.bf16.gmra.mxu0 %v1249
      %v1263 = vpop.f32.mrf.mxu0
      %v1264 = vadd.f32 %v1224, %v1263
      %v1265 = vpop.f32.mrf.mxu0
      %v1266 = vadd.f32 %v1224, %v1265
      %1267 = vmatmul.bf16.gmra.mxu0 %v1252
      %v1268 = vpop.f32.mrf.mxu0
      %v1269 = vadd.f32 %v1224, %v1268
      %v1270 = vpop.f32.mrf.mxu0
      %v1271 = vadd.f32 %v1224, %v1270
      %1272 = vdwg.mxu0
      %v1273 = vpack.c.bf16 %v1264, %v1264
      %v1274 = vpack.c.bf16 %v1266, %v1266
      %v1275 = vpack.c.bf16 %v1269, %v1269
      %v1276 = vpack.c.bf16 %v1271, %v1271
      %1277 = vst.msk [vmem:[%s519] sm:$0xf] %vm1213, %v1273
      %1278 = vst.msk [vmem:[%s519 + $0x4] sm:$0xf] %vm1213, %v1274
      %1279 = vst.msk [vmem:[%s519 + $0x8] sm:$0xf] %vm1213, %v1275
      %1280 = vst.msk [vmem:[%s519 + $0xc] sm:$0xf] %vm1213, %v1276
      %s1281 = smul.u32 4, %s30
      %p1282 = scmp.lt.s32.totalorder %s29, 1
      %s1283 = scalar_select %p1282, %s29, 1
      %p1284 = scmp.lt.s32.totalorder %s1281, 7
      %s1285 = scalar_select %p1284, %s1281, 7
      %s1286 = smul.addr %s1283, 8
      %s1287 = sadd.s32 %s1285, %s1286
      %s1288 = smul.addr %s1287, 4
      %s1289 = scalar_lea.vmem %s12, %s1288
      %s1290 = smul.u32 4, %s30
      %p1291 = scmp.lt.s32.totalorder %s29, 1
      %s1292 = scalar_select %p1291, %s29, 1
      %p1293 = scmp.lt.s32.totalorder %s1290, 7
      %s1294 = scalar_select %p1293, %s1290, 7
      %s1295 = smul.addr %s1292, 8
      %s1296 = sadd.s32 %s1294, %s1295
      %s1297 = smul.addr %s1296, 4
      %s1298 = scalar_lea.vmem %s13, %s1297
      // Predicated region
      $region69: #{tpu_custom_call.1} parent=67 // pred_check
        %p1299 = pneg %p321
      $region70: #{tpu_custom_call.1} parent=67 // pred_check_branch
        %1301 = sbr.rel (%p1299) target = $region72
      $region71: #{tpu_custom_call.1} parent=67 // pred_region
        %s1302 = smul.u32 4, %s30
      $region72: #{tpu_custom_call.1} parent=67 // pred_fallthru
        _
      // Predicated region
      $region73: #{tpu_custom_call.1} parent=67 // pred_check
        %p1303 = pneg %p349
      $region74: #{tpu_custom_call.1} parent=67 // pred_check_branch
        %1305 = sbr.rel (%p1303) target = $region76
      $region75: #{tpu_custom_call.1} parent=67 // pred_region
        %s1306 = smul.u32 4, %s30
      $region76: #{tpu_custom_call.1} parent=67 // pred_fallthru
        _
    $region68: #{tpu_custom_call.1} parent=5 // pred_fallthru
      _
    %p1307 = scmp.le.s32.totalorder 2, %s20
    // Predicated region
    $region77: #{tpu_custom_call.1} parent=5 // pred_check
      %p1308 = pneg %p1307
    $region78: #{tpu_custom_call.1} parent=5 // pred_check_branch
      %1310 = sbr.rel (%p1308) target = $region80
    $region79: #{tpu_custom_call.1} parent=5 // pred_region
      %s1311 = ssub.s32 %s20, 2
      // Predicated region
      $region81: #{tpu_custom_call.1} parent=79 // pred_check
        %p1312 = pneg %p327
      $region82: #{tpu_custom_call.1} parent=79 // pred_check_branch
        %1314 = sbr.rel (%p1312) target = $region84
      $region83: #{tpu_custom_call.1} parent=79 // pred_region
        %s1315 = smul.u32 4, %s32
        %p1316 = scmp.lt.s32.totalorder %s31, 1
        %s1317 = scalar_select %p1316, %s31, 1
        %p1318 = scmp.lt.s32.totalorder %s1315, 7
        %s1319 = scalar_select %p1318, %s1315, 7
        %s1320 = smul.addr %s1317, 8
        %s1321 = sadd.s32 %s1319, %s1320
        %s1322 = smul.addr %s1321, 4
        %s1323 = scalar_lea.vmem %s12, %s1322
      $region84: #{tpu_custom_call.1} parent=79 // pred_fallthru
        _
      // Predicated region
      $region85: #{tpu_custom_call.1} parent=79 // pred_check
        %p1324 = pneg %p355
      $region86: #{tpu_custom_call.1} parent=79 // pred_check_branch
        %1326 = sbr.rel (%p1324) target = $region88
      $region87: #{tpu_custom_call.1} parent=79 // pred_region
        %s1327 = smul.u32 4, %s32
        %p1328 = scmp.lt.s32.totalorder %s31, 1
        %s1329 = scalar_select %p1328, %s31, 1
        %p1330 = scmp.lt.s32.totalorder %s1327, 7
        %s1331 = scalar_select %p1330, %s1327, 7
        %s1332 = smul.addr %s1329, 8
        %s1333 = sadd.s32 %s1331, %s1332
        %s1334 = smul.addr %s1333, 4
        %s1335 = scalar_lea.vmem %s13, %s1334
      $region88: #{tpu_custom_call.1} parent=79 // pred_fallthru
        _
    $region80: #{tpu_custom_call.1} parent=5 // pred_fallthru
      _
  $region6: #{tpu_custom_call.1} parent=0 // loop_footer
    %s24 = sadd.s32 1, %s20
  $region7: #{tpu_custom_call.1} parent=0 // loop_footer_branch
    %19 = sbr.rel target = $region3
  $region8: #{tpu_custom_call.1} parent=0 // loop_exit
    _

</llo_original>
